<compile_context>
chip_gen: v7x
topology: tpu7x:2x2x1
jax: 0.10.0
libtpu: 0.0.40
codegen_flags: <defaults>
</compile_context>

<pallas_src>
import functools

import jax
import jax.numpy as jnp
from jax import lax
from jax.experimental import pallas as pl
from jax.experimental.pallas import tpu as pltpu

EPS = 1e-5


def _prelu(x, a):
    return jnp.where(x > 0, x, a * x)


# ----------------------------- fused kernel --------------------------------
def fused_downsample_kernel(TH, Wo, W, Cin, Cinp, width, Cout, mm_dtype,
                            x_main_ref, x_halo_ref, w1_ref, w2_ref, b2_ref,
                            w3_ref, b3_ref, alpha_ref, out_ref, idx_ref):
    F = 4 * Cinp
    Wc = x_main_ref.shape[1]           # packed block-columns (Wo + pad)
    a1 = alpha_ref[0]                  # PReLU alphas as SMEM scalars
    a2 = alpha_ref[1]
    aout = alpha_ref[2]

    # Window of TH+1 packed-block rows: main tile + one halo row (same HBM
    # array, read via a second BlockSpec -- no HBM duplication).
    xw = jnp.concatenate([x_main_ref[...], x_halo_ref[...]], axis=0)

    # conv1 (1x1, BN scale + bias folded via the indicator channel) + PReLU,
    # computed ONCE for every packed pixel of the window.  The block-diagonal
    # weight keeps the 4-pixel packing in the output channel dim.
    nwin = (TH + 1) * Wc
    y1 = _prelu(
        jnp.dot(xw.reshape(nwin, F).astype(mm_dtype), w1_ref[...],
                preferred_element_type=jnp.float32), a1)
    y1 = y1.reshape(TH + 1, Wc, 4 * width)

    # conv2 (3x3 stride-2, BN folded): one matmul with K = 16*width by
    # lane-concatenating the four shift-by-one views of y1.
    cat = jnp.concatenate(
        [y1[0:TH, 0:Wo, :], y1[0:TH, 1:Wo + 1, :],
         y1[1:TH + 1, 0:Wo, :], y1[1:TH + 1, 1:Wo + 1, :]], axis=-1)
    rows = TH * Wo
    y2 = _prelu(
        jnp.dot(cat.reshape(rows, 16 * width).astype(mm_dtype), w2_ref[...],
                preferred_element_type=jnp.float32) + b2_ref[...], a2)

    # conv3 (1x1, BN folded, no relu)
    y3 = jnp.dot(y2.astype(mm_dtype), w3_ref[...],
                 preferred_element_type=jnp.float32) + b3_ref[...]
    # TODO(synk): nn.Dropout2d is identity in eval mode; train-mode channel
    # dropout (random channel zeroing + 1/(1-p) scale) is not implemented.

    # 2x2 max-pool (+argmax flat indices) of the ORIGINAL input: the four
    # window pixels are lane-slices of the packed views.  Candidate scan
    # order (0,0),(0,1),(1,0),(1,1) with strict ">" keeps the first max
    # (PyTorch tie-breaking).  Pooling math stays f32-exact.
    c00 = xw[0:TH, 0:Wo, 3 * Cinp:3 * Cinp + Cin]
    c01 = xw[0:TH, 1:Wo + 1, 2 * Cinp:2 * Cinp + Cin]
    c10 = xw[1:TH + 1, 0:Wo, 1 * Cinp:1 * Cinp + Cin]
    c11 = xw[1:TH + 1, 1:Wo + 1, 0:Cin]
    m = c00
    off = jnp.zeros((TH, Wo, Cin), jnp.int32)
    for cand, o in ((c01, 1), (c10, W), (c11, W + 1)):
        take = cand > m
        m = jnp.where(take, cand, m)
        off = jnp.where(take, jnp.int32(o), off)

    # flat index base built in-kernel (int32; valid for H*W < 2^31)
    r0 = TH * pl.program_id(1)
    ri = lax.broadcasted_iota(jnp.int32, (TH, Wo, Cin), 0)
    ci = lax.broadcasted_iota(jnp.int32, (TH, Wo, Cin), 1)
    idx_ref[...] = 2 * (r0 + ri) * W + 2 * ci + off

    # residual: zero-pad pooled channels Cin -> Cout, add, final PReLU.
    m2d = m.reshape(rows, Cin)
    if Cout > Cin:
        res = jnp.concatenate(
            [m2d, jnp.zeros((rows, Cout - Cin), jnp.float32)], axis=-1)
    else:
        res = m2d
    out_ref[...] = _prelu(y3 + res, aout)


# ------------------------------ parameters ---------------------------------
def init_raw_params(key, in_channels, out_channels, projection_ratio=4):
    width = in_channels // projection_ratio
    ks = jax.random.split(key, 6)

    def bn_params(k, c):
        k1, k2, k3, k4 = jax.random.split(k, 4)
        return (jax.random.uniform(k1, (c,), jnp.float32, 0.5, 1.5),   # gamma
                0.1 * jax.random.normal(k2, (c,), jnp.float32),        # beta
                0.1 * jax.random.normal(k3, (c,), jnp.float32),        # running_mean
                jax.random.uniform(k4, (c,), jnp.float32, 0.5, 1.5))   # running_var

    return dict(
        conv1_w=0.5 * jax.random.normal(ks[0], (width, in_channels, 1, 1), jnp.float32),
        bn1=bn_params(ks[1], width), a1=0.25,
        conv2_w=0.5 * jax.random.normal(ks[2], (width, width, 3, 3), jnp.float32),
        bn2=bn_params(ks[3], width), a2=0.2,
        conv3_w=0.5 * jax.random.normal(ks[4], (out_channels, width, 1, 1), jnp.float32),
        bn3=bn_params(ks[5], out_channels), aout=0.3,
        width=width, in_channels=in_channels, out_channels=out_channels,
    )


def fold_params(raw):
    """Fold BatchNorm into conv weights and build the packed matrices."""
    width, cin, cout = raw["width"], raw["in_channels"], raw["out_channels"]

    def scale_shift(bn):
        g, b, m, v = bn
        s = g / jnp.sqrt(v + EPS)
        return s, b - m * s

    # conv1: (cin -> width), BN bias folded in as an extra input row that the
    # always-one indicator channel multiplies.  Block-diagonal over the 4
    # packed pixel positions so one matmul handles the whole packed window.
    s1, b1 = scale_shift(raw["bn1"])
    w1 = raw["conv1_w"].reshape(width, cin).T * s1[None, :]          # (cin, width)
    w1aug = jnp.concatenate([w1, b1[None, :]], axis=0)               # (cin+1, width)
    w1blk = jnp.kron(jnp.eye(4, dtype=jnp.float32), w1aug)           # (4*(cin+1), 4*width)

    # conv2: 3x3 stride-2 taps rearranged into one stacked (16*width, width)
    # matrix; row block (view, pos) holds the tap hitting that packed pixel.
    # View order (0,0),(0,1),(1,0),(1,1) matches the in-kernel lane concat.
    s2, b2 = scale_shift(raw["bn2"])
    w2t = jnp.transpose(raw["conv2_w"], (2, 3, 1, 0)) * s2[None, None, None, :]
    a = jnp.zeros((2, 2, 4 * width, width), jnp.float32)
    for kh in range(3):
        dr, pr = divmod(kh, 2)
        for kw in range(3):
            dc, pc = divmod(kw, 2)
            pos = pr * 2 + pc
            a = a.at[dr, dc, pos * width:(pos + 1) * width, :].set(w2t[kh, kw])
    w2cat = a.reshape(16 * width, width)

    # conv3: (width -> cout), BN folded, no relu.
    s3, b3 = scale_shift(raw["bn3"])
    w3 = raw["conv3_w"].reshape(cout, width).T * s3[None, :]         # (width, cout)

    return dict(
        w1blk=w1blk, w2cat=w2cat, b2=b2[None, :], w3=w3, b3=b3[None, :],
        alphas=jnp.array([raw["a1"], raw["a2"], raw["aout"]], jnp.float32),
        width=width, in_channels=cin, out_channels=cout,
    )


# --------------------------- VMEM-aware tiling ------------------------------
def _rup(x, m):
    return (x + m - 1) // m * m


def _tile_bytes(r, c, itemsize=4):
    """Bytes of an (r, c) buffer after (8, 128) sublane/lane tile padding."""
    return _rup(max(r, 1), 8) * _rup(max(c, 1), 128) * itemsize


def _est_vmem(TH, Wo, Wc, F, width, Cin, Cout):
    """Padding-aware per-grid-step VMEM estimate (conservative)."""
    w4, w16 = 4 * width, 16 * width
    rows, nwin = TH * Wo, (TH + 1) * Wc
    # double-buffered pipeline slabs (streamed inputs + outputs)
    dbuf = 2 * (TH * _tile_bytes(Wc, F)            # main input block
                + _tile_bytes(Wc, F)               # halo row block
                + _tile_bytes(rows, Cout)          # out block
                + TH * _tile_bytes(Wo, Cin))       # idx block
    # weights (count double-buffered to stay conservative)
    wts = 2 * (_tile_bytes(F, w4) + _tile_bytes(w16, width)
               + _tile_bytes(width, Cout) + 2 * _tile_bytes(1, max(width, Cout)))
    # major live intermediates (f32 plus bf16 matmul-operand copies)
    live = ((TH + 1) * _tile_bytes(Wc, F)          # concatenated window
            + _tile_bytes(nwin, F) // 2            # bf16 copy of window
            + 2 * _tile_bytes(nwin, w4)            # y1 + its 3-D view
            + 2 * _tile_bytes(rows, w16)           # cat + bf16 copy
            + 2 * _tile_bytes(rows, width)         # y2 + bf16 copy
            + 3 * _tile_bytes(rows, Cout)          # y3, residual, out temp
            + 6 * TH * _tile_bytes(Wo, Cin))       # pool candidates / m / off / idx
    return dbuf + wts + live


def _pick_row_tile(Ho, Wo, Wc, F, width, Cin, Cout, budget_bytes, batch,
                   max_row_tile=None):
    """Largest divisor of Ho that fits the VMEM budget and keeps >=2 steps."""
    cap = Ho if max_row_tile is None else min(Ho, max_row_tile)
    for th in range(cap, 0, -1):
        if Ho % th:
            continue
        if th > 1 and batch * (Ho // th) < 2:
            continue  # keep >= 2 grid steps: v7x has 2 TCs + pipeline overlap
        if _est_vmem(th, Wo, Wc, F, width, Cin, Cout) <= budget_bytes:
            return th
    return 1


def _vmem_caps():
    """Generation-aware (v5e/v6e: 128 MiB, v7x: 64 MiB) budget and limit."""
    cap = 128 * 1024 * 1024
    try:
        info = pltpu.get_tpu_info()
        cap = int(getattr(info, "vmem_capacity_bytes", cap)) or cap
    except Exception:
        pass
    budget = max(8 << 20, min(20 << 20, cap // 5))
    limit = max(32 << 20, min(48 << 20, cap // 2))
    return budget, limit


# ------------------------------- forward -----------------------------------
def downsampling_block_forward(x_nchw, p, *, matmul_dtype=jnp.bfloat16,
                               vmem_budget_bytes=None, max_row_tile=None):
    B, Cin, H, W = x_nchw.shape
    assert H % 2 == 0 and W % 2 == 0
    Ho, Wo = H // 2, W // 2
    assert Wo % 8 == 0, "W/2 must be a multiple of 8 for this kernel"
    width, Cout = p["width"], p["out_channels"]
    assert Cout >= Cin, "DownsamplingBlock requires out_channels >= in_channels"
    Cinp = Cin + 1
    F = 4 * Cinp
    Wc = Wo + 8   # packed block-columns padded to a sublane multiple so every
                  # in-kernel reshape is layout-preserving

    # Pack the input: NHWC + always-one indicator channel (zero in the padding
    # ring) + zero ring + 2x2 pixel-block packing -> (B, Ho+1, Wc, 4*(Cin+1)).
    # TODO(synk): this packing is still a couple of fused XLA passes over the
    # input; folding it into the kernel (NCHW in, in-kernel gather) is a
    # further HBM-traffic win.
    x = jnp.transpose(x_nchw, (0, 2, 3, 1)).astype(jnp.float32)
    xa = jnp.concatenate([x, jnp.ones((B, H, W, 1), jnp.float32)], axis=-1)
    xp = jnp.pad(xa, ((0, 0), (1, 1), (1, 2 * Wc - W - 1), (0, 0)))
    xblk = xp.reshape(B, Ho + 1, 2, Wc, 2, Cinp)
    xblk = jnp.transpose(xblk, (0, 1, 3, 2, 4, 5)).reshape(B, Ho + 1, Wc, F)

    budget_default, vmem_limit = _vmem_caps()
    budget = budget_default if vmem_budget_bytes is None else vmem_budget_bytes
    TH = _pick_row_tile(Ho, Wo, Wc, F, width, Cin, Cout, budget, B, max_row_tile)
    nT = Ho // TH

    w1 = p["w1blk"].astype(matmul_dtype)
    w2 = p["w2cat"].astype(matmul_dtype)
    w3 = p["w3"].astype(matmul_dtype)

    kern = functools.partial(fused_downsample_kernel,
                             TH, Wo, W, Cin, Cinp, width, Cout, matmul_dtype)
    out3, idx4 = pl.pallas_call(
        kern,
        out_shape=(jax.ShapeDtypeStruct((B, Ho * Wo, Cout), jnp.float32),
                   jax.ShapeDtypeStruct((B, Ho, Wo, Cin), jnp.int32)),
        grid_spec=pltpu.PrefetchScalarGridSpec(
            num_scalar_prefetch=0,
            grid=(B, nT),
            in_specs=[
                # main TH packed-block rows of this tile
                pl.BlockSpec((None, TH, Wc, F), lambda b, t: (b, t, 0, 0)),
                # one-row halo: same HBM array, row (t+1)*TH (block size 1)
                pl.BlockSpec((None, 1, Wc, F),
                             lambda b, t: (b, (t + 1) * TH, 0, 0)),
                pl.BlockSpec((F, 4 * width), lambda b, t: (0, 0)),
                pl.BlockSpec((16 * width, width), lambda b, t: (0, 0)),
                pl.BlockSpec((1, width), lambda b, t: (0, 0)),
                pl.BlockSpec((width, Cout), lambda b, t: (0, 0)),
                pl.BlockSpec((1, Cout), lambda b, t: (0, 0)),
                pl.BlockSpec(memory_space=pltpu.MemorySpace.SMEM),
            ],
            out_specs=[
                pl.BlockSpec((None, TH * Wo, Cout), lambda b, t: (b, t, 0)),
                pl.BlockSpec((None, TH, Wo, Cin), lambda b, t: (b, t, 0, 0)),
            ],
        ),
        compiler_params=pltpu.CompilerParams(
            dimension_semantics=("parallel", "parallel"),
            vmem_limit_bytes=vmem_limit),
    )(xblk, xblk, w1, w2, p["b2"], w3, p["b3"], p["alphas"])

    out = jnp.transpose(out3.reshape(B, Ho, Wo, Cout), (0, 3, 1, 2))
    idx = jnp.transpose(idx4, (0, 3, 1, 2))
    return out, idx


# --------------------------- pure-JAX reference -----------------------------
def reference_forward(x_nchw, raw):
    x = x_nchw.astype(jnp.float32)

    def bn(y, stats):
        g, b, m, v = stats
        s = g / jnp.sqrt(v + EPS)
        return y * s[None, :, None, None] + (b - m * s)[None, :, None, None]

    dn = ("NCHW", "OIHW", "NCHW")
    y = lax.conv_general_dilated(x, raw["conv1_w"], (1, 1), "VALID", dimension_numbers=dn)
    y = _prelu(bn(y, raw["bn1"]), raw["a1"])
    y = lax.conv_general_dilated(y, raw["conv2_w"], (2, 2), ((1, 1), (1, 1)), dimension_numbers=dn)
    y = _prelu(bn(y, raw["bn2"]), raw["a2"])
    y = lax.conv_general_dilated(y, raw["conv3_w"], (1, 1), "VALID", dimension_numbers=dn)
    y = bn(y, raw["bn3"])

    B, Cin, H, W = x.shape
    Ho, Wo = H // 2, W // 2
    xr = x.reshape(B, Cin, Ho, 2, Wo, 2)
    pooled = xr.max(axis=(3, 5))
    win = xr.transpose(0, 1, 2, 4, 3, 5).reshape(B, Cin, Ho, Wo, 4)
    k = jnp.argmax(win, axis=-1)
    kh, kw = k // 2, k % 2
    ho = jnp.arange(Ho)[None, None, :, None]
    wo = jnp.arange(Wo)[None, None, None, :]
    idx = (2 * ho + kh) * W + (2 * wo + kw)

    Cout = y.shape[1]
    if Cout > Cin:
        pooled = jnp.concatenate(
            [pooled, jnp.zeros((B, Cout - Cin, Ho, Wo), jnp.float32)], axis=1)
    out = _prelu(y + pooled, raw["aout"])
    return out, idx.astype(jnp.int32)


if __name__ == "__main__":
    key = jax.random.PRNGKey(0)
    kx, kp = jax.random.split(key)
    B, Cin, H, W = 2, 8, 16, 16
    Cout = 16

    x = jax.random.normal(kx, (B, Cin, H, W), jnp.float32)
    raw = init_raw_params(kp, Cin, Cout)
    p = fold_params(raw)
    out_r, idx_r = reference_forward(x, raw)

    # f32 matmul operands (exact path)
    out, idx = downsampling_block_forward(x, p, matmul_dtype=jnp.float32)
    out, idx = jax.block_until_ready((out, idx))
    assert out.shape == (B, Cout, H // 2, W // 2)
    assert idx.shape == (B, Cin, H // 2, W // 2)
    assert jnp.allclose(out, out_r, atol=1e-4, rtol=1e-4), \
        float(jnp.max(jnp.abs(out - out_r)))
    assert jnp.array_equal(idx, idx_r)

    # multi-row-tile path (exercises the halo-row BlockSpec and a 2x4 grid)
    out_t, idx_t = downsampling_block_forward(x, p, matmul_dtype=jnp.float32,
                                              max_row_tile=2)
    out_t, idx_t = jax.block_until_ready((out_t, idx_t))
    assert jnp.allclose(out_t, out_r, atol=1e-4, rtol=1e-4)
    assert jnp.array_equal(idx_t, idx_r)

    # default path: bf16 matmul operands (MXU-native on v5e/v6e/v7x),
    # f32 accumulation; pooling values and argmax indices stay exact.
    out_b, idx_b = downsampling_block_forward(x, p)
    out_b, idx_b = jax.block_until_ready((out_b, idx_b))
    assert jnp.array_equal(idx_b, idx_r)
    assert jnp.allclose(out_b, out_r, atol=0.5, rtol=0.1)

    print("KERNEL_OK")
</pallas_src>

<mosaic_0001>
module attributes {stable_mosaic.version = 11 : i64} {
  func.func @fused_downsample_kernel(%arg0: i32, %arg1: i32, %arg2: memref<1x8x16x36xf32, #tpu.memory_space<vmem>>, %arg3: memref<1x1x16x36xf32, #tpu.memory_space<vmem>>, %arg4: memref<36x8xf32, #tpu.memory_space<vmem>>, %arg5: memref<32x2xf32, #tpu.memory_space<vmem>>, %arg6: memref<1x2xf32, #tpu.memory_space<vmem>>, %arg7: memref<2x16xf32, #tpu.memory_space<vmem>>, %arg8: memref<1x16xf32, #tpu.memory_space<vmem>>, %arg9: memref<3xf32, #tpu.memory_space<smem>>, %arg10: memref<1x64x16xf32, #tpu.memory_space<vmem>>, %arg11: memref<1x8x8x8xi32, #tpu.memory_space<vmem>>) attributes {dimension_semantics = [#tpu.dimension_semantics<parallel>, #tpu.dimension_semantics<parallel>], iteration_bounds = array<i64: 2, 1>, scalar_prefetch = 0 : i64, scratch_operands = 0 : i64, tpu.core_type = #tpu.core_type<tc>, window_params = [{transform_indices = @transform_0, window_bounds = array<i64: 1, 8, 16, 36>}, {transform_indices = @transform_1, window_bounds = array<i64: 1, 1, 16, 36>}, {pipeline_mode = #tpu.pipeline_mode<synchronous>, transform_indices = @transform_2, window_bounds = array<i64: 36, 8>}, {pipeline_mode = #tpu.pipeline_mode<synchronous>, transform_indices = @transform_3, window_bounds = array<i64: 32, 2>}, {pipeline_mode = #tpu.pipeline_mode<synchronous>, transform_indices = @transform_4, window_bounds = array<i64: 1, 2>}, {pipeline_mode = #tpu.pipeline_mode<synchronous>, transform_indices = @transform_5, window_bounds = array<i64: 2, 16>}, {pipeline_mode = #tpu.pipeline_mode<synchronous>, transform_indices = @transform_6, window_bounds = array<i64: 1, 16>}, {transform_indices = @transform_7, window_bounds = array<i64: 3>}, {transform_indices = @transform_8, window_bounds = array<i64: 1, 64, 16>}, {transform_indices = @transform_9, window_bounds = array<i64: 1, 8, 8, 8>}]} {
    %c0 = arith.constant 0 : index
    %0 = memref.load %arg9[%c0] : memref<3xf32, #tpu.memory_space<smem>>
    %c1 = arith.constant 1 : index
    %1 = memref.load %arg9[%c1] : memref<3xf32, #tpu.memory_space<smem>>
    %c2 = arith.constant 2 : index
    %2 = memref.load %arg9[%c2] : memref<3xf32, #tpu.memory_space<smem>>
    %c0_0 = arith.constant 0 : index
    %c0_1 = arith.constant 0 : index
    %c0_2 = arith.constant 0 : index
    %c0_3 = arith.constant 0 : index
    %3 = vector.load %arg2[%c0_0, %c0_1, %c0_2, %c0_3] : memref<1x8x16x36xf32, #tpu.memory_space<vmem>>, vector<1x8x16x36xf32>
    %4 = vector.shape_cast %3 : vector<1x8x16x36xf32> to vector<8x16x36xf32>
    %c0_4 = arith.constant 0 : index
    %c0_5 = arith.constant 0 : index
    %c0_6 = arith.constant 0 : index
    %c0_7 = arith.constant 0 : index
    %5 = vector.load %arg3[%c0_4, %c0_5, %c0_6, %c0_7] : memref<1x1x16x36xf32, #tpu.memory_space<vmem>>, vector<1x1x16x36xf32>
    %6 = vector.shape_cast %5 : vector<1x1x16x36xf32> to vector<1x16x36xf32>
    %7 = tpu.concatenate %4, %6 in 0 : vector<8x16x36xf32>, vector<1x16x36xf32> -> vector<9x16x36xf32>
    %8 = vector.shape_cast %7 : vector<9x16x36xf32> to vector<144x36xf32>
    %c0_8 = arith.constant 0 : index
    %c0_9 = arith.constant 0 : index
    %9 = vector.load %arg4[%c0_8, %c0_9] : memref<36x8xf32, #tpu.memory_space<vmem>>, vector<36x8xf32>
    %cst = arith.constant dense<0.000000e+00> : vector<144x8xf32>
    %10 = tpu.matmul %8, %9, %cst {dimension_numbers = #tpu.dot_dimension_numbers<[1], [0], [0], [1], [0, 0, 1, 1], [], []>} : vector<144x36xf32>, vector<36x8xf32>, vector<144x8xf32> -> vector<144x8xf32>
    %cst_10 = arith.constant 0.000000e+00 : f32
    %11 = vector.broadcast %cst_10 : f32 to vector<144x8xf32>
    %12 = arith.cmpf ogt, %10, %11 : vector<144x8xf32>
    %13 = vector.broadcast %0 : f32 to vector<144x8xf32>
    %14 = arith.mulf %13, %10 : vector<144x8xf32>
    %15 = arith.select %12, %10, %14 : vector<144x8xi1>, vector<144x8xf32>
    %16 = vector.shape_cast %15 : vector<144x8xf32> to vector<9x16x8xf32>
    %17 = vector.extract_strided_slice %16 {offsets = [0, 0, 0], sizes = [8, 8, 8], strides = [1, 1, 1]} : vector<9x16x8xf32> to vector<8x8x8xf32>
    %18 = vector.extract_strided_slice %16 {offsets = [0, 1, 0], sizes = [8, 8, 8], strides = [1, 1, 1]} : vector<9x16x8xf32> to vector<8x8x8xf32>
    %19 = vector.extract_strided_slice %16 {offsets = [1, 0, 0], sizes = [8, 8, 8], strides = [1, 1, 1]} : vector<9x16x8xf32> to vector<8x8x8xf32>
    %20 = vector.extract_strided_slice %16 {offsets = [1, 1, 0], sizes = [8, 8, 8], strides = [1, 1, 1]} : vector<9x16x8xf32> to vector<8x8x8xf32>
    %21 = tpu.concatenate %17, %18, %19, %20 in 2 : vector<8x8x8xf32>, vector<8x8x8xf32>, vector<8x8x8xf32>, vector<8x8x8xf32> -> vector<8x8x32xf32>
    %22 = vector.shape_cast %21 : vector<8x8x32xf32> to vector<64x32xf32>
    %c0_11 = arith.constant 0 : index
    %c0_12 = arith.constant 0 : index
    %23 = vector.load %arg5[%c0_11, %c0_12] : memref<32x2xf32, #tpu.memory_space<vmem>>, vector<32x2xf32>
    %cst_13 = arith.constant dense<0.000000e+00> : vector<64x2xf32>
    %24 = tpu.matmul %22, %23, %cst_13 {dimension_numbers = #tpu.dot_dimension_numbers<[1], [0], [0], [1], [0, 0, 1, 1], [], []>} : vector<64x32xf32>, vector<32x2xf32>, vector<64x2xf32> -> vector<64x2xf32>
    %c0_14 = arith.constant 0 : index
    %c0_15 = arith.constant 0 : index
    %25 = vector.load %arg6[%c0_14, %c0_15] : memref<1x2xf32, #tpu.memory_space<vmem>>, vector<1x2xf32>
    %26 = vector.broadcast %25 : vector<1x2xf32> to vector<64x2xf32>
    %27 = arith.addf %24, %26 : vector<64x2xf32>
    %cst_16 = arith.constant 0.000000e+00 : f32
    %28 = vector.broadcast %cst_16 : f32 to vector<64x2xf32>
    %29 = arith.cmpf ogt, %27, %28 : vector<64x2xf32>
    %30 = vector.broadcast %1 : f32 to vector<64x2xf32>
    %31 = arith.mulf %30, %27 : vector<64x2xf32>
    %32 = arith.select %29, %27, %31 : vector<64x2xi1>, vector<64x2xf32>
    %c0_17 = arith.constant 0 : index
    %c0_18 = arith.constant 0 : index
    %33 = vector.load %arg7[%c0_17, %c0_18] : memref<2x16xf32, #tpu.memory_space<vmem>>, vector<2x16xf32>
    %cst_19 = arith.constant dense<0.000000e+00> : vector<64x16xf32>
    %34 = tpu.matmul %32, %33, %cst_19 {dimension_numbers = #tpu.dot_dimension_numbers<[1], [0], [0], [1], [0, 0, 1, 1], [], []>} : vector<64x2xf32>, vector<2x16xf32>, vector<64x16xf32> -> vector<64x16xf32>
    %c0_20 = arith.constant 0 : index
    %c0_21 = arith.constant 0 : index
    %35 = vector.load %arg8[%c0_20, %c0_21] : memref<1x16xf32, #tpu.memory_space<vmem>>, vector<1x16xf32>
    %36 = vector.broadcast %35 : vector<1x16xf32> to vector<64x16xf32>
    %37 = arith.addf %34, %36 : vector<64x16xf32>
    %38 = vector.extract_strided_slice %7 {offsets = [0, 0, 27], sizes = [8, 8, 8], strides = [1, 1, 1]} : vector<9x16x36xf32> to vector<8x8x8xf32>
    %39 = vector.extract_strided_slice %7 {offsets = [0, 1, 18], sizes = [8, 8, 8], strides = [1, 1, 1]} : vector<9x16x36xf32> to vector<8x8x8xf32>
    %40 = vector.extract_strided_slice %7 {offsets = [1, 0, 9], sizes = [8, 8, 8], strides = [1, 1, 1]} : vector<9x16x36xf32> to vector<8x8x8xf32>
    %41 = vector.extract_strided_slice %7 {offsets = [1, 1, 0], sizes = [8, 8, 8], strides = [1, 1, 1]} : vector<9x16x36xf32> to vector<8x8x8xf32>
    %c0_i32 = arith.constant 0 : i32
    %42 = vector.broadcast %c0_i32 : i32 to vector<8x8x8xi32>
    %43 = arith.cmpf ogt, %39, %38 : vector<8x8x8xf32>
    %44 = arith.select %43, %39, %38 : vector<8x8x8xi1>, vector<8x8x8xf32>
    %c1_i32 = arith.constant 1 : i32
    %45 = vector.broadcast %c1_i32 : i32 to vector<8x8x8xi32>
    %46 = arith.select %43, %45, %42 : vector<8x8x8xi1>, vector<8x8x8xi32>
    %47 = arith.cmpf ogt, %40, %44 : vector<8x8x8xf32>
    %48 = arith.select %47, %40, %44 : vector<8x8x8xi1>, vector<8x8x8xf32>
    %c16_i32 = arith.constant 16 : i32
    %49 = vector.broadcast %c16_i32 : i32 to vector<8x8x8xi32>
    %50 = arith.select %47, %49, %46 : vector<8x8x8xi1>, vector<8x8x8xi32>
    %51 = arith.cmpf ogt, %41, %48 : vector<8x8x8xf32>
    %52 = arith.select %51, %41, %48 : vector<8x8x8xi1>, vector<8x8x8xf32>
    %c17_i32 = arith.constant 17 : i32
    %53 = vector.broadcast %c17_i32 : i32 to vector<8x8x8xi32>
    %54 = arith.select %51, %53, %50 : vector<8x8x8xi1>, vector<8x8x8xi32>
    %c8_i32 = arith.constant 8 : i32
    %55 = arith.muli %c8_i32, %arg1 : i32
    %56 = tpu.iota {dimensions = array<i32: 0>} : vector<8x8x8xi32>
    %57 = tpu.iota {dimensions = array<i32: 1>} : vector<8x8x8xi32>
    %58 = vector.broadcast %55 : i32 to vector<8x8x8xi32>
    %59 = arith.addi %58, %56 : vector<8x8x8xi32>
    %c2_i32 = arith.constant 2 : i32
    %60 = vector.broadcast %c2_i32 : i32 to vector<8x8x8xi32>
    %61 = arith.muli %60, %59 : vector<8x8x8xi32>
    %c16_i32_22 = arith.constant 16 : i32
    %62 = vector.broadcast %c16_i32_22 : i32 to vector<8x8x8xi32>
    %63 = arith.muli %61, %62 : vector<8x8x8xi32>
    %c2_i32_23 = arith.constant 2 : i32
    %64 = vector.broadcast %c2_i32_23 : i32 to vector<8x8x8xi32>
    %65 = arith.muli %64, %57 : vector<8x8x8xi32>
    %66 = arith.addi %63, %65 : vector<8x8x8xi32>
    %67 = arith.addi %66, %54 : vector<8x8x8xi32>
    %c0_24 = arith.constant 0 : index
    %c0_25 = arith.constant 0 : index
    %c0_26 = arith.constant 0 : index
    %c0_27 = arith.constant 0 : index
    %68 = vector.load %arg11[%c0_24, %c0_25, %c0_26, %c0_27] : memref<1x8x8x8xi32, #tpu.memory_space<vmem>>, vector<1x8x8x8xi32>
    %69 = vector.shape_cast %68 : vector<1x8x8x8xi32> to vector<8x8x8xi32>
    %70 = vector.shape_cast %67 : vector<8x8x8xi32> to vector<1x8x8x8xi32>
    tpu.vector_store %arg11[%c0_24, %c0_25, %c0_26, %c0_27], %70 {strides = array<i32>} : memref<1x8x8x8xi32, #tpu.memory_space<vmem>>, vector<1x8x8x8xi32>,
    %71 = vector.shape_cast %52 : vector<8x8x8xf32> to vector<64x8xf32>
    %cst_28 = arith.constant 0.000000e+00 : f32
    %72 = vector.broadcast %cst_28 : f32 to vector<64x8xf32>
    %73 = tpu.concatenate %71, %72 in 1 : vector<64x8xf32>, vector<64x8xf32> -> vector<64x16xf32>
    %74 = arith.addf %37, %73 : vector<64x16xf32>
    %cst_29 = arith.constant 0.000000e+00 : f32
    %75 = vector.broadcast %cst_29 : f32 to vector<64x16xf32>
    %76 = arith.cmpf ogt, %74, %75 : vector<64x16xf32>
    %77 = vector.broadcast %2 : f32 to vector<64x16xf32>
    %78 = arith.mulf %77, %74 : vector<64x16xf32>
    %79 = arith.select %76, %74, %78 : vector<64x16xi1>, vector<64x16xf32>
    %c0_30 = arith.constant 0 : index
    %c0_31 = arith.constant 0 : index
    %c0_32 = arith.constant 0 : index
    %80 = vector.load %arg10[%c0_30, %c0_31, %c0_32] : memref<1x64x16xf32, #tpu.memory_space<vmem>>, vector<1x64x16xf32>
    %81 = vector.shape_cast %80 : vector<1x64x16xf32> to vector<64x16xf32>
    %82 = vector.shape_cast %79 : vector<64x16xf32> to vector<1x64x16xf32>
    tpu.vector_store %arg10[%c0_30, %c0_31, %c0_32], %82 {strides = array<i32>} : memref<1x64x16xf32, #tpu.memory_space<vmem>>, vector<1x64x16xf32>,
    return
  }
  func.func @transform_0(%arg0: i32, %arg1: i32) -> (i32, i32, i32, i32) {
    %c0_i32 = arith.constant 0 : i32
    %c0_i32_0 = arith.constant 0 : i32
    %c0_i32_1 = arith.constant 0 : i32
    return %arg0, %arg1, %c0_i32, %c0_i32_0 : i32, i32, i32, i32
  }
  func.func @transform_1(%arg0: i32, %arg1: i32) -> (i32, i32, i32, i32) {
    %c1_i32 = arith.constant 1 : i32
    %0 = arith.addi %arg1, %c1_i32 : i32
    %c8_i32 = arith.constant 8 : i32
    %1 = arith.muli %0, %c8_i32 : i32
    %c0_i32 = arith.constant 0 : i32
    %c0_i32_0 = arith.constant 0 : i32
    %c0_i32_1 = arith.constant 0 : i32
    return %arg0, %1, %c0_i32, %c0_i32_0 : i32, i32, i32, i32
  }
  func.func @transform_2(%arg0: i32, %arg1: i32) -> (i32, i32) {
    %c0_i32 = arith.constant 0 : i32
    %c0_i32_0 = arith.constant 0 : i32
    %c0_i32_1 = arith.constant 0 : i32
    return %c0_i32, %c0_i32_0 : i32, i32
  }
  func.func @transform_3(%arg0: i32, %arg1: i32) -> (i32, i32) {
    %c0_i32 = arith.constant 0 : i32
    %c0_i32_0 = arith.constant 0 : i32
    %c0_i32_1 = arith.constant 0 : i32
    return %c0_i32, %c0_i32_0 : i32, i32
  }
  func.func @transform_4(%arg0: i32, %arg1: i32) -> (i32, i32) {
    %c0_i32 = arith.constant 0 : i32
    %c0_i32_0 = arith.constant 0 : i32
    %c0_i32_1 = arith.constant 0 : i32
    return %c0_i32, %c0_i32_0 : i32, i32
  }
  func.func @transform_5(%arg0: i32, %arg1: i32) -> (i32, i32) {
    %c0_i32 = arith.constant 0 : i32
    %c0_i32_0 = arith.constant 0 : i32
    %c0_i32_1 = arith.constant 0 : i32
    return %c0_i32, %c0_i32_0 : i32, i32
  }
  func.func @transform_6(%arg0: i32, %arg1: i32) -> (i32, i32) {
    %c0_i32 = arith.constant 0 : i32
    %c0_i32_0 = arith.constant 0 : i32
    %c0_i32_1 = arith.constant 0 : i32
    return %c0_i32, %c0_i32_0 : i32, i32
  }
  func.func @transform_7(%arg0: i32, %arg1: i32) -> i32 {
    %c0_i32 = arith.constant 0 : i32
    %c0_i32_0 = arith.constant 0 : i32
    return %c0_i32 : i32
  }
  func.func @transform_8(%arg0: i32, %arg1: i32) -> (i32, i32, i32) {
    %c0_i32 = arith.constant 0 : i32
    %c0_i32_0 = arith.constant 0 : i32
    return %arg0, %arg1, %c0_i32 : i32, i32, i32
  }
  func.func @transform_9(%arg0: i32, %arg1: i32) -> (i32, i32, i32, i32) {
    %c0_i32 = arith.constant 0 : i32
    %c0_i32_0 = arith.constant 0 : i32
    %c0_i32_1 = arith.constant 0 : i32
    return %arg0, %arg1, %c0_i32, %c0_i32_0 : i32, i32, i32, i32
  }
}

</mosaic_0001>

<llo_original>
// kernel: tpu_custom_call.1
$region0: #{tpu_custom_call.1}
  #allocation0 [shape = 'u32[]', space=smem, size = 0x4, offset = 0x4, fixed_abs, tag = 'smem constant byte address 0x4 - core index']
  #allocation1 [shape = 'u32[144,128]{1,0:T(1,128)}', space=vmem, size = 0x12000, scoped, tag = 'internal scratch']
  %s0 = inlined_call_operand.hbm [shape: f32[2,9,16,36], index: 0, kind: input, shape index: {}]
  %s1 = inlined_call_operand.hbm [shape: f32[2,9,16,36], index: 1, kind: input, shape index: {}]
  %s2 = inlined_call_operand.vmem [shape: f32[36,8], index: 2, kind: input, shape index: {}]
  %s3 = inlined_call_operand.vmem [shape: f32[32,2], index: 3, kind: input, shape index: {}]
  %s4 = inlined_call_operand.vmem [shape: f32[1,2], index: 4, kind: input, shape index: {}]
  %s5 = inlined_call_operand.vmem [shape: f32[2,16], index: 5, kind: input, shape index: {}]
  %s6 = inlined_call_operand.vmem [shape: f32[1,16], index: 6, kind: input, shape index: {}]
  %s7 = inlined_call_operand.vmem [shape: f32[3], index: 7, kind: input, shape index: {}]
  %s8 = inlined_call_operand.vmem [shape: f32[2,64,16], index: 8, kind: output, shape index: {0}]
  %s9 = inlined_call_operand.hbm [shape: s32[2,8,8,8], index: 9, kind: output, shape index: {1}]
  %10 = xla_tuple %s8, %s9
  %s11 = sld [smem:[#allocation0]]
  $region85: #{tpu_custom_call.1} parent=0
    _
  %s13 = ssub.s32 1, %s11
  %s14 = scalar_select 0, %s13, %s11
  $region1: #{tpu_custom_call.1} parent=0
    #allocation2 [shape = 'u8[131072]{0}', space=vmem, size = 0x20000, scoped, tag = 'input window, operand 0']
    #allocation3 [shape = 's32[2]{0}', space=sflag, size = 0x8, scoped, tag = 'scoped memory for tpu_custom_call.1']
    #allocation4 [shape = 's32[2]{0}', space=sflag, size = 0x8, scoped, tag = 'scoped memory for tpu_custom_call.1']
    #allocation5 [shape = 's32[2]{0}', space=sflag, size = 0x8, scoped, tag = 'scoped memory for tpu_custom_call.1']
    #allocation6 [shape = 'u8[16384]{0}', space=vmem, size = 0x4000, scoped, tag = 'input window, operand 1']
    #allocation7 [shape = 's32[2]{0}', space=sflag, size = 0x8, scoped, tag = 'scoped memory for tpu_custom_call.1']
    #allocation8 [shape = 'u8[512]{0}', space=smem, size = 0x200, scoped, tag = 'input window, operand 7, single buffered']
    #allocation9 [shape = 'u8[65536]{0}', space=vmem, size = 0x10000, scoped, tag = 'output window, operand 1']
    %15 = vsyncpa [#allocation3], 0
    %s16 = scalar_lea.sflag [#allocation3], 1
    %17 = vsyncpa %s16, 0
    %18 = vsyncpa [#allocation7], 0
    %s19 = scalar_lea.sflag [#allocation7], 1
    %20 = vsyncpa %s19, 0
    %21 = vsyncpa [#allocation5], 0
    %22 = vsyncpa [#allocation4], 0
    %s23 = scalar_lea.sflag [#allocation4], 1
    %24 = vsyncpa %s23, 0
    loop: start=0, step=1, limit=4
    $region2: #{tpu_custom_call.1} parent=1 // loop_pre_header
      _
    $region3: #{tpu_custom_call.1} parent=1 // loop_header
      %s26 = sphi 0, %s30
      %p27 = scmp.ge.s32.totalorder %s26, 4
      %s33 = sphi 0, %s45
      %s34 = sphi 0, %s41
      %s35 = sphi 0, %s33
      %s36 = sphi 0, %s34
      %s37 = sphi 0, %s35
      %s38 = sphi 0, %s36
      %s50 = sphi 0, %s52
      %s53 = sphi 0, %s50
      %s54 = sphi 0, %s53
      %s70 = sphi 0, %s54
      %s82 = sphi 0, %s84
      %s85 = sphi 0, %s82
      %s86 = sphi 0, %s85
      %s102 = sphi 0, %s86
      %s106 = sphi 0, %s106
      %s108 = sphi 0, %s106
      %s109 = sphi 0, %s108
      %s123 = sphi 0, %s109
      %s127 = sphi 0, %s127
      %s129 = sphi 0, %s127
      %s130 = sphi 0, %s129
      %s144 = sphi 0, %s130
      %s148 = sphi 0, %s148
      %s150 = sphi 0, %s148
      %s151 = sphi 0, %s150
      %s165 = sphi 0, %s151
      %s169 = sphi 0, %s169
      %s171 = sphi 0, %s169
      %s172 = sphi 0, %s171
      %s186 = sphi 0, %s172
      %s190 = sphi 0, %s190
      %s192 = sphi 0, %s190
      %s193 = sphi 0, %s192
      %s207 = sphi 0, %s193
      %s211 = sphi 0, %s211
      %s213 = sphi 0, %s211
      %s214 = sphi 0, %s213
      %s228 = sphi 0, %s214
      %s236 = sphi 0, %s238
      %s239 = sphi 0, %s236
      %s240 = sphi 0, %s239
      %s256 = sphi 0, %s240
      %s264 = sphi 0, %s266
      %s267 = sphi 0, %s264
      %s268 = sphi 0, %s267
      %s284 = sphi 0, %s268
    $region4: #{tpu_custom_call.1} parent=1 // loop_header_branch
      %29 = sbr.rel (%p27) target = $region8
    $region5: #{tpu_custom_call.1} parent=1 // loop_body
      %s31 = ssub.s32 %s26, 1
      %s32 = ssub.s32 %s26, 2
      %s39 = sadd.s32 1, %s34
      %p40 = scmp.ge.s32.totalorder %s39, 1
      %s41 = scalar_select %p40, 0, %s39
      %s42 = sadd.s32 1, %s33
      %s43 = scalar_select %p40, %s42, %s33
      %p44 = scmp.ge.s32.totalorder %s43, 2
      %s45 = scalar_select %p44, 0, %s43
      %s46 = ssub.s32 %s33, %s45
      %s47 = ssub.s32 %s34, %s41
      %s48 = sor.u32 %s46, %s47
      %p49 = scmp.eq.s32.totalorder %s48, 0
      %s51 = sadd.s32 %s50, 1
      %s52 = scalar_select %p49, %s50, %s51
      %p55 = pneg %p49
      %p56 = scmp.eq.s32.totalorder %s26, 1
      %p57 = por %p55, %p56
      %p58 = scmp.ne.s32.totalorder %s50, %s53
      %p59 = scmp.eq.s32.totalorder %s26, 0
      %p60 = por %p58, %p59
      %p61 = scmp.ne.s32.totalorder %s50, %s53
      %p62 = scmp.eq.s32.totalorder %s31, 1
      %p63 = por %p61, %p62
      %p64 = scmp.ne.s32.totalorder %s53, %s54
      %p65 = scmp.eq.s32.totalorder %s31, 0
      %p66 = por %p64, %p65
      %p67 = scmp.ne.s32.totalorder %s53, %s54
      %p68 = scmp.eq.s32.totalorder %s32, 1
      %p69 = por %p67, %p68
      %p71 = scmp.ne.s32.totalorder %s54, %s70
      %p72 = scmp.eq.s32.totalorder %s32, 0
      %p73 = por %p71, %p72
      %s74 = sadd.s32 %s34, 1
      %s75 = smul.u32 %s74, 8
      %s76 = sadd.s32 %s41, 1
      %s77 = smul.u32 %s76, 8
      %s78 = ssub.s32 %s33, %s45
      %s79 = ssub.s32 %s75, %s77
      %s80 = sor.u32 %s78, %s79
      %p81 = scmp.eq.s32.totalorder %s80, 0
      %s83 = sadd.s32 %s82, 1
      %s84 = scalar_select %p81, %s82, %s83
      %p87 = pneg %p81
      %p88 = scmp.eq.s32.totalorder %s26, 1
      %p89 = por %p87, %p88
      %p90 = scmp.ne.s32.totalorder %s82, %s85
      %p91 = scmp.eq.s32.totalorder %s26, 0
      %p92 = por %p90, %p91
      %p93 = scmp.ne.s32.totalorder %s82, %s85
      %p94 = scmp.eq.s32.totalorder %s31, 1
      %p95 = por %p93, %p94
      %p96 = scmp.ne.s32.totalorder %s85, %s86
      %p97 = scmp.eq.s32.totalorder %s31, 0
      %p98 = por %p96, %p97
      %p99 = scmp.ne.s32.totalorder %s85, %s86
      %p100 = scmp.eq.s32.totalorder %s32, 1
      %p101 = por %p99, %p100
      %p103 = scmp.ne.s32.totalorder %s86, %s102
      %p104 = scmp.eq.s32.totalorder %s32, 0
      %p105 = por %p103, %p104
      %s107 = sadd.s32 %s106, 1
      %p110 = scmp.eq.s32.totalorder %s26, 1
      %p111 = scmp.ne.s32.totalorder %s106, %s108
      %p112 = scmp.eq.s32.totalorder %s26, 0
      %p113 = por %p111, %p112
      %p114 = scmp.ne.s32.totalorder %s106, %s108
      %p115 = scmp.eq.s32.totalorder %s31, 1
      %p116 = por %p114, %p115
      %p117 = scmp.ne.s32.totalorder %s108, %s109
      %p118 = scmp.eq.s32.totalorder %s31, 0
      %p119 = por %p117, %p118
      %p120 = scmp.ne.s32.totalorder %s108, %s109
      %p121 = scmp.eq.s32.totalorder %s32, 1
      %p122 = por %p120, %p121
      %p124 = scmp.ne.s32.totalorder %s109, %s123
      %p125 = scmp.eq.s32.totalorder %s32, 0
      %p126 = por %p124, %p125
      %s128 = sadd.s32 %s127, 1
      %p131 = scmp.eq.s32.totalorder %s26, 1
      %p132 = scmp.ne.s32.totalorder %s127, %s129
      %p133 = scmp.eq.s32.totalorder %s26, 0
      %p134 = por %p132, %p133
      %p135 = scmp.ne.s32.totalorder %s127, %s129
      %p136 = scmp.eq.s32.totalorder %s31, 1
      %p137 = por %p135, %p136
      %p138 = scmp.ne.s32.totalorder %s129, %s130
      %p139 = scmp.eq.s32.totalorder %s31, 0
      %p140 = por %p138, %p139
      %p141 = scmp.ne.s32.totalorder %s129, %s130
      %p142 = scmp.eq.s32.totalorder %s32, 1
      %p143 = por %p141, %p142
      %p145 = scmp.ne.s32.totalorder %s130, %s144
      %p146 = scmp.eq.s32.totalorder %s32, 0
      %p147 = por %p145, %p146
      %s149 = sadd.s32 %s148, 1
      %p152 = scmp.eq.s32.totalorder %s26, 1
      %p153 = scmp.ne.s32.totalorder %s148, %s150
      %p154 = scmp.eq.s32.totalorder %s26, 0
      %p155 = por %p153, %p154
      %p156 = scmp.ne.s32.totalorder %s148, %s150
      %p157 = scmp.eq.s32.totalorder %s31, 1
      %p158 = por %p156, %p157
      %p159 = scmp.ne.s32.totalorder %s150, %s151
      %p160 = scmp.eq.s32.totalorder %s31, 0
      %p161 = por %p159, %p160
      %p162 = scmp.ne.s32.totalorder %s150, %s151
      %p163 = scmp.eq.s32.totalorder %s32, 1
      %p164 = por %p162, %p163
      %p166 = scmp.ne.s32.totalorder %s151, %s165
      %p167 = scmp.eq.s32.totalorder %s32, 0
      %p168 = por %p166, %p167
      %s170 = sadd.s32 %s169, 1
      %p173 = scmp.eq.s32.totalorder %s26, 1
      %p174 = scmp.ne.s32.totalorder %s169, %s171
      %p175 = scmp.eq.s32.totalorder %s26, 0
      %p176 = por %p174, %p175
      %p177 = scmp.ne.s32.totalorder %s169, %s171
      %p178 = scmp.eq.s32.totalorder %s31, 1
      %p179 = por %p177, %p178
      %p180 = scmp.ne.s32.totalorder %s171, %s172
      %p181 = scmp.eq.s32.totalorder %s31, 0
      %p182 = por %p180, %p181
      %p183 = scmp.ne.s32.totalorder %s171, %s172
      %p184 = scmp.eq.s32.totalorder %s32, 1
      %p185 = por %p183, %p184
      %p187 = scmp.ne.s32.totalorder %s172, %s186
      %p188 = scmp.eq.s32.totalorder %s32, 0
      %p189 = por %p187, %p188
      %s191 = sadd.s32 %s190, 1
      %p194 = scmp.eq.s32.totalorder %s26, 1
      %p195 = scmp.ne.s32.totalorder %s190, %s192
      %p196 = scmp.eq.s32.totalorder %s26, 0
      %p197 = por %p195, %p196
      %p198 = scmp.ne.s32.totalorder %s190, %s192
      %p199 = scmp.eq.s32.totalorder %s31, 1
      %p200 = por %p198, %p199
      %p201 = scmp.ne.s32.totalorder %s192, %s193
      %p202 = scmp.eq.s32.totalorder %s31, 0
      %p203 = por %p201, %p202
      %p204 = scmp.ne.s32.totalorder %s192, %s193
      %p205 = scmp.eq.s32.totalorder %s32, 1
      %p206 = por %p204, %p205
      %p208 = scmp.ne.s32.totalorder %s193, %s207
      %p209 = scmp.eq.s32.totalorder %s32, 0
      %p210 = por %p208, %p209
      %s212 = sadd.s32 %s211, 1
      %p215 = scmp.eq.s32.totalorder %s26, 1
      %p216 = scmp.ne.s32.totalorder %s211, %s213
      %p217 = scmp.eq.s32.totalorder %s26, 0
      %p218 = por %p216, %p217
      %p219 = scmp.ne.s32.totalorder %s211, %s213
      %p220 = scmp.eq.s32.totalorder %s31, 1
      %p221 = por %p219, %p220
      %p222 = scmp.ne.s32.totalorder %s213, %s214
      %p223 = scmp.eq.s32.totalorder %s31, 0
      %p224 = por %p222, %p223
      %p225 = scmp.ne.s32.totalorder %s213, %s214
      %p226 = scmp.eq.s32.totalorder %s32, 1
      %p227 = por %p225, %p226
      %p229 = scmp.ne.s32.totalorder %s214, %s228
      %p230 = scmp.eq.s32.totalorder %s32, 0
      %p231 = por %p229, %p230
      %s232 = ssub.s32 %s33, %s45
      %s233 = ssub.s32 %s34, %s41
      %s234 = sor.u32 %s232, %s233
      %p235 = scmp.eq.s32.totalorder %s234, 0
      %s237 = sadd.s32 %s236, 1
      %s238 = scalar_select %p235, %s236, %s237
      %p241 = pneg %p235
      %p242 = scmp.eq.s32.totalorder %s26, 1
      %p243 = por %p241, %p242
      %p244 = scmp.ne.s32.totalorder %s236, %s239
      %p245 = scmp.eq.s32.totalorder %s26, 0
      %p246 = por %p244, %p245
      %p247 = scmp.ne.s32.totalorder %s236, %s239
      %p248 = scmp.eq.s32.totalorder %s31, 1
      %p249 = por %p247, %p248
      %p250 = scmp.ne.s32.totalorder %s239, %s240
      %p251 = scmp.eq.s32.totalorder %s31, 0
      %p252 = por %p250, %p251
      %p253 = scmp.ne.s32.totalorder %s239, %s240
      %p254 = scmp.eq.s32.totalorder %s32, 1
      %p255 = por %p253, %p254
      %p257 = scmp.ne.s32.totalorder %s240, %s256
      %p258 = scmp.eq.s32.totalorder %s32, 0
      %p259 = por %p257, %p258
      %s260 = ssub.s32 %s33, %s45
      %s261 = ssub.s32 %s34, %s41
      %s262 = sor.u32 %s260, %s261
      %p263 = scmp.eq.s32.totalorder %s262, 0
      %s265 = sadd.s32 %s264, 1
      %s266 = scalar_select %p263, %s264, %s265
      %p269 = pneg %p263
      %p270 = scmp.eq.s32.totalorder %s26, 1
      %p271 = por %p269, %p270
      %p272 = scmp.ne.s32.totalorder %s264, %s267
      %p273 = scmp.eq.s32.totalorder %s26, 0
      %p274 = por %p272, %p273
      %p275 = scmp.ne.s32.totalorder %s264, %s267
      %p276 = scmp.eq.s32.totalorder %s31, 1
      %p277 = por %p275, %p276
      %p278 = scmp.ne.s32.totalorder %s267, %s268
      %p279 = scmp.eq.s32.totalorder %s31, 0
      %p280 = por %p278, %p279
      %p281 = scmp.ne.s32.totalorder %s267, %s268
      %p282 = scmp.eq.s32.totalorder %s32, 1
      %p283 = por %p281, %p282
      %p285 = scmp.ne.s32.totalorder %s268, %s284
      %p286 = scmp.eq.s32.totalorder %s32, 0
      %p287 = por %p285, %p286
      %p288 = scmp.le.s32.totalorder 1, %s26
      %p289 = scmp.lt.s32.totalorder %s26, 3
      %p290 = pnand %p288, %p289
      %p291 = pneg %p290
      // Predicated region
      $region9: #{tpu_custom_call.1} parent=5 // pred_check
        _
      $region10: #{tpu_custom_call.1} parent=5 // pred_check_branch
        %293 = sbr.rel (%p290) target = $region12
      $region11: #{tpu_custom_call.1} parent=5 // pred_region
        %s294 = ssub.s32 %s26, 1
        // Predicated region
        $region13: #{tpu_custom_call.1} parent=11 // pred_check
          %p295 = pneg %p119
        $region14: #{tpu_custom_call.1} parent=11 // pred_check_branch
          %297 = sbr.rel (%p295) target = $region16
        $region15: #{tpu_custom_call.1} parent=11 // pred_region
          _
        $region16: #{tpu_custom_call.1} parent=11 // pred_fallthru
          _
        // Predicated region
        $region17: #{tpu_custom_call.1} parent=11 // pred_check
          %p298 = pneg %p140
        $region18: #{tpu_custom_call.1} parent=11 // pred_check_branch
          %300 = sbr.rel (%p298) target = $region20
        $region19: #{tpu_custom_call.1} parent=11 // pred_region
          _
        $region20: #{tpu_custom_call.1} parent=11 // pred_fallthru
          _
        // Predicated region
        $region21: #{tpu_custom_call.1} parent=11 // pred_check
          %p301 = pneg %p161
        $region22: #{tpu_custom_call.1} parent=11 // pred_check_branch
          %303 = sbr.rel (%p301) target = $region24
        $region23: #{tpu_custom_call.1} parent=11 // pred_region
          _
        $region24: #{tpu_custom_call.1} parent=11 // pred_fallthru
          _
        // Predicated region
        $region25: #{tpu_custom_call.1} parent=11 // pred_check
          %p304 = pneg %p182
        $region26: #{tpu_custom_call.1} parent=11 // pred_check_branch
          %306 = sbr.rel (%p304) target = $region28
        $region27: #{tpu_custom_call.1} parent=11 // pred_region
          _
        $region28: #{tpu_custom_call.1} parent=11 // pred_fallthru
          _
        // Predicated region
        $region29: #{tpu_custom_call.1} parent=11 // pred_check
          %p307 = pneg %p203
        $region30: #{tpu_custom_call.1} parent=11 // pred_check_branch
          %309 = sbr.rel (%p307) target = $region32
        $region31: #{tpu_custom_call.1} parent=11 // pred_region
          _
        $region32: #{tpu_custom_call.1} parent=11 // pred_fallthru
          _
        // Predicated region
        $region33: #{tpu_custom_call.1} parent=11 // pred_check
          %p310 = pneg %p224
        $region34: #{tpu_custom_call.1} parent=11 // pred_check_branch
          %312 = sbr.rel (%p310) target = $region36
        $region35: #{tpu_custom_call.1} parent=11 // pred_region
          %s314 = ssub.s32 16, 16
          %315 = vsyncadd [#allocation5], %s314
          %s317 = sshll.u32 %s7, 4
          %s318 = int_to_ptr.vmem [resolvable:$true] %s317
          %320 = dma.vmem_to_smem %s318, 16, [#allocation8], [#allocation5]
        $region36: #{tpu_custom_call.1} parent=11 // pred_fallthru
          _
      $region12: #{tpu_custom_call.1} parent=5 // pred_fallthru
        _
      %p321 = scmp.lt.s32.totalorder %s26, 2
      // Predicated region
      $region37: #{tpu_custom_call.1} parent=5 // pred_check
        %p322 = pneg %p321
      $region38: #{tpu_custom_call.1} parent=5 // pred_check_branch
        %324 = sbr.rel (%p322) target = $region40
      $region39: #{tpu_custom_call.1} parent=5 // pred_region
        // Predicated region
        $region41: #{tpu_custom_call.1} parent=39 // pred_check
          %p325 = pneg %p60
        $region42: #{tpu_custom_call.1} parent=39 // pred_check_branch
          %327 = sbr.rel (%p325) target = $region44
        $region43: #{tpu_custom_call.1} parent=39 // pred_region
          %s328 = sand.u32 %s50, 1
          %s329 = scalar_lea.sflag [#allocation3], %s328
          %s330 = sand.u32 %s50, 1
          %s331 = smul.addr %s330, 128
          %s332 = scalar_lea.vmem [#allocation2], %s331
          %s333 = smul.u32 8, %s34
          %s334 = ssub.s32 9, %s333
          %p335 = scmp.lt.s32.totalorder %s334, 8
          %s336 = scalar_select %p335, %s334, 8
          %s337 = smul.u32 128, %s336
          %s338 = smul.u32 %s337, 2
          %s340 = ssub.s32 2048, %s338
          %341 = vsyncadd %s329, %s340
          %p342 = scmp.ne.s32.totalorder 0, %s338
          %s343 = smul.addr %s333, 2
          %s344 = smul.addr %s33, 18
          %s345 = sadd.s32 %s343, %s344
          %s346 = smul.addr %s345, 128
          %s347 = scalar_lea.hbm %s0, %s346
          %s348 = smul.u32 %s336, 2
          %s349 = smul.u32 8, %s348
          %s350 = sshll.u32 %s332, 4
          %s351 = int_to_ptr.vmem [resolvable:$true] %s350
          %s352 = sshll.u32 %s349, 4
          %356 = dma.hbm_to_vmem [thread:$0]  (%p342), %s347, %s352, %s351, %s329, 128, 128, 8
        $region44: #{tpu_custom_call.1} parent=39 // pred_fallthru
          _
        // Predicated region
        $region45: #{tpu_custom_call.1} parent=39 // pred_check
          %p357 = pneg %p92
        $region46: #{tpu_custom_call.1} parent=39 // pred_check_branch
          %359 = sbr.rel (%p357) target = $region48
        $region47: #{tpu_custom_call.1} parent=39 // pred_region
          %s360 = sand.u32 %s82, 1
          %s361 = scalar_lea.sflag [#allocation7], %s360
          %s362 = sand.u32 %s82, 1
          %s363 = smul.addr %s362, 16
          %s364 = scalar_lea.vmem [#allocation6], %s363
          %s365 = sadd.s32 %s34, 1
          %s366 = smul.u32 %s365, 8
          %s368 = ssub.s32 256, 256
          %369 = vsyncadd %s361, %s368
          %s370 = smul.addr %s366, 2
          %s371 = smul.addr %s33, 18
          %s372 = sadd.s32 %s370, %s371
          %s373 = smul.addr %s372, 128
          %s374 = scalar_lea.hbm %s1, %s373
          %s375 = sshll.u32 %s364, 4
          %s376 = int_to_ptr.vmem [resolvable:$true] %s375
          %381 = dma.hbm_to_vmem [thread:$0]  %s374, 256, %s376, %s361, 128, 128, 8
        $region48: #{tpu_custom_call.1} parent=39 // pred_fallthru
          _
      $region40: #{tpu_custom_call.1} parent=5 // pred_fallthru
        _
      %p382 = scmp.le.s32.totalorder 1, %s26
      %p383 = scmp.lt.s32.totalorder %s26, 3
      %p384 = pnand %p382, %p383
      %p385 = pneg %p384
      // Predicated region
      $region49: #{tpu_custom_call.1} parent=5 // pred_check
        _
      $region50: #{tpu_custom_call.1} parent=5 // pred_check_branch
        %387 = sbr.rel (%p384) target = $region52
      $region51: #{tpu_custom_call.1} parent=5 // pred_region
        %s388 = ssub.s32 %s26, 1
        %s389 = sand.u32 %s53, 1
        %s390 = scalar_lea.sflag [#allocation3], %s389
        %s391 = sand.u32 %s53, 1
        %s392 = smul.addr %s391, 128
        %s393 = scalar_lea.vmem [#allocation2], %s392
        // Predicated region
        $region53: #{tpu_custom_call.1} parent=51 // pred_check
          %p394 = pneg %p66
        $region54: #{tpu_custom_call.1} parent=51 // pred_check_branch
          %396 = sbr.rel (%p394) target = $region56
        $region55: #{tpu_custom_call.1} parent=51 // pred_region
          %397 = dma.done %s390, 2048
        $region56: #{tpu_custom_call.1} parent=51 // pred_fallthru
          _
        %s398 = sand.u32 %s85, 1
        %s399 = scalar_lea.sflag [#allocation7], %s398
        %s400 = sand.u32 %s85, 1
        %s401 = smul.addr %s400, 16
        %s402 = scalar_lea.vmem [#allocation6], %s401
        // Predicated region
        $region57: #{tpu_custom_call.1} parent=51 // pred_check
          %p403 = pneg %p98
        $region58: #{tpu_custom_call.1} parent=51 // pred_check_branch
          %405 = sbr.rel (%p403) target = $region60
        $region59: #{tpu_custom_call.1} parent=51 // pred_region
          %406 = dma.done %s399, 256
        $region60: #{tpu_custom_call.1} parent=51 // pred_fallthru
          _
        // Predicated region
        $region61: #{tpu_custom_call.1} parent=51 // pred_check
          %p407 = pneg %p224
        $region62: #{tpu_custom_call.1} parent=51 // pred_check_branch
          %409 = sbr.rel (%p407) target = $region64
        $region63: #{tpu_custom_call.1} parent=51 // pred_region
          %410 = dma.done [#allocation5], 16
        $region64: #{tpu_custom_call.1} parent=51 // pred_fallthru
          _
        %411 = sfence
        %s412 = sand.u32 %s53, 1
        %s413 = scalar_lea.sflag [#allocation3], %s412
        %s414 = sand.u32 %s53, 1
        %s415 = smul.addr %s414, 128
        %s416 = scalar_lea.vmem [#allocation2], %s415
        %p417 = pneg %p66
        %p418 = pneg %p63
        %s419 = sand.u32 %s85, 1
        %s420 = scalar_lea.sflag [#allocation7], %s419
        %s421 = sand.u32 %s85, 1
        %s422 = smul.addr %s421, 16
        %s423 = scalar_lea.vmem [#allocation6], %s422
        %p424 = pneg %p98
        %p425 = pneg %p95
        %p426 = pneg %p119
        %p427 = pneg %p116
        %p428 = pneg %p140
        %p429 = pneg %p137
        %p430 = pneg %p161
        %p431 = pneg %p158
        %p432 = pneg %p182
        %p433 = pneg %p179
        %p434 = pneg %p203
        %p435 = pneg %p200
        %p436 = pneg %p224
        %p437 = pneg %p221
        %p438 = pneg %p252
        %p439 = pneg %p249
        %s440 = smul.u32 8, %s36
        %p441 = scmp.lt.s32.totalorder %s35, 1
        %s442 = scalar_select %p441, %s35, 1
        %p443 = scmp.lt.s32.totalorder %s440, 7
        %s444 = scalar_select %p443, %s440, 7
        %s445 = smul.addr %s442, 8
        %s446 = sadd.s32 %s444, %s445
        %s447 = smul.addr %s446, 8
        %s448 = scalar_lea.vmem %s8, %s447
        %p449 = pneg %p280
        %p450 = pneg %p277
        %s451 = sand.u32 %s267, 1
        %s452 = scalar_lea.sflag [#allocation4], %s451
        %s453 = sand.u32 %s267, 1
        %s454 = smul.addr %s453, 64
        %s455 = scalar_lea.vmem [#allocation9], %s454
        %s456 = smul.u32 8, %s36
        %s457 = ssub.s32 9, %s456
        %p458 = scmp.lt.s32.totalorder %s457, 8
        %s459 = scalar_select %p458, %s457, 8
        %s460 = smul.u32 128, %s459
        %s461 = smul.u32 %s460, 2
        %s462 = sadd.s32 %s36, 1
        %s463 = smul.u32 %s462, 8
        %s464 = smul.u32 8, %s36
        %p465 = scmp.lt.s32.totalorder %s35, 1
        %s466 = scalar_select %p465, %s35, 1
        %p467 = scmp.lt.s32.totalorder %s464, 7
        %s468 = scalar_select %p467, %s464, 7
        %s469 = smul.addr %s466, 8
        %s470 = sadd.s32 %s468, %s469
        %s471 = smul.addr %s470, 8
        %s472 = scalar_lea.vmem %s8, %s471
        %s473 = smul.u32 8, %s36
        %s474 = smul.u32 8, %s36
        %s475 = sld [smem:[#allocation8]]
        %s476 = sld [smem:[#allocation8 + $0x1]]
        %s477 = sld [smem:[#allocation8 + $0x2]]
        %v478 = vld [vmem:[%s393] sm:$0xff]
        %v479 = vld [vmem:[%s393 + $0x8] sm:$0xff]
        %v480 = vld [vmem:[%s393 + $0x10] sm:$0xff]
        %v481 = vld [vmem:[%s393 + $0x18] sm:$0xff]
        %v482 = vld [vmem:[%s393 + $0x20] sm:$0xff]
        %v483 = vld [vmem:[%s393 + $0x28] sm:$0xff]
        %v484 = vld [vmem:[%s393 + $0x30] sm:$0xff]
        %v485 = vld [vmem:[%s393 + $0x38] sm:$0xff]
        %v486 = vld [vmem:[%s393 + $0x40] sm:$0xff]
        %v487 = vld [vmem:[%s393 + $0x48] sm:$0xff]
        %v488 = vld [vmem:[%s393 + $0x50] sm:$0xff]
        %v489 = vld [vmem:[%s393 + $0x58] sm:$0xff]
        %v490 = vld [vmem:[%s393 + $0x60] sm:$0xff]
        %v491 = vld [vmem:[%s393 + $0x68] sm:$0xff]
        %v492 = vld [vmem:[%s393 + $0x70] sm:$0xff]
        %v493 = vld [vmem:[%s393 + $0x78] sm:$0xff]
        %v494 = vld [vmem:[%s402] sm:$0xff]
        %v495 = vld [vmem:[%s402 + $0x8] sm:$0xff]
        %v496 = vld [vmem:[%s2] sm:$0xff]
        %v497 = vld [vmem:[%s2 + $0x8] sm:$0xff]
        %v498 = vld [vmem:[%s2 + $0x10] sm:$0xff]
        %v499 = vld [vmem:[%s2 + $0x18] sm:$0xff]
        %v500 = vld [vmem:[%s2 + $0x20] sm:$0xf]
        %vm501 = vcmask 293888
        %v503 = vsel %vm501, %v478, 0
        %v506 = vsel %vm501, %v479, 0
        %v509 = vsel %vm501, %v480, 0
        %v512 = vsel %vm501, %v481, 0
        %v515 = vsel %vm501, %v482, 0
        %v518 = vsel %vm501, %v483, 0
        %v521 = vsel %vm501, %v484, 0
        %v524 = vsel %vm501, %v485, 0
        %v527 = vsel %vm501, %v486, 0
        %v530 = vsel %vm501, %v487, 0
        %v533 = vsel %vm501, %v488, 0
        %v536 = vsel %vm501, %v489, 0
        %v539 = vsel %vm501, %v490, 0
        %v542 = vsel %vm501, %v491, 0
        %v545 = vsel %vm501, %v492, 0
        %v548 = vsel %vm501, %v493, 0
        %v551 = vsel %vm501, %v494, 0
        %v554 = vsel %vm501, %v495, 0
        %vm556 = vcmask 1043456
        %v558 = vsel %vm556, %v500, 0
        %560 = vmatprep.subr.mxu0 0.0
        %561 = vmatpush1.msra.mxu0 %v496
        %562 = vmatprep.subr.mxu0 0.0
        %563 = vmatpush1.msra.mxu0 %v497
        %564 = vmatprep.subr.mxu0 0.0
        %565 = vmatpush1.msra.mxu0 %v498
        %566 = vmatprep.subr.mxu0 0.0
        %567 = vmatpush1.msra.mxu0 %v499
        %568 = vmatprep.subr.mxu0 0.0
        %569 = vmatpush1.msra.mxu0 %v558
        %570 = vmatprep.subr.mxu0 0.0
        %571 = vmatpush1.msra.mxu0 0.0
        %572 = vmatprep.subr.mxu0 0.0
        %573 = vmatpush1.msra.mxu0 0.0
        %574 = vmatprep.subr.mxu0 0.0
        %575 = vmatpush1.msra.mxu0 0.0
        %576 = vmatprep.subr.mxu0 0.0
        %577 = vmatpush1.msra.mxu0 0.0
        %578 = vmatprep.subr.mxu0 0.0
        %579 = vmatpush1.msra.mxu0 0.0
        %580 = vmatprep.subr.mxu0 0.0
        %581 = vmatpush1.msra.mxu0 0.0
        %582 = vmatprep.subr.mxu0 0.0
        %583 = vmatpush1.msra.mxu0 0.0
        %584 = vmatprep.subr.mxu0 0.0
        %585 = vmatpush1.msra.mxu0 0.0
        %586 = vmatprep.subr.mxu0 0.0
        %587 = vmatpush1.msra.mxu0 0.0
        %588 = vmatprep.subr.mxu0 0.0
        %589 = vmatpush1.msra.mxu0 0.0
        %590 = vmatprep.subr.mxu0 0.0
        %591 = vmatpush1.msra.mxu0 0.0
        %592 = vmatprep.subr.mxu0 0.0
        %593 = vmatpush1.msra.mxu0 0.0
        %594 = vmatprep.subr.mxu0 0.0
        %595 = vmatpush1.msra.mxu0 0.0
        %596 = vmatprep.subr.mxu0 0.0
        %597 = vmatpush1.msra.mxu0 0.0
        %598 = vmatprep.subr.mxu0 0.0
        %599 = vmatpush1.msra.mxu0 0.0
        %600 = vmatprep.subr.mxu0 0.0
        %601 = vmatpush1.msra.mxu0 0.0
        %602 = vmatprep.subr.mxu0 0.0
        %603 = vmatpush1.msra.mxu0 0.0
        %604 = vmatprep.subr.mxu0 0.0
        %605 = vmatpush1.msra.mxu0 0.0
        %606 = vmatprep.subr.mxu0 0.0
        %607 = vmatpush1.msra.mxu0 0.0
        %608 = vmatprep.subr.mxu0 0.0
        %609 = vmatpush1.msra.mxu0 0.0
        %610 = vmatprep.subr.mxu0 0.0
        %611 = vmatpush1.msra.mxu0 0.0
        %612 = vmatprep.subr.mxu0 0.0
        %613 = vmatpush1.msra.mxu0 0.0
        %614 = vmatprep.subr.mxu0 0.0
        %615 = vmatpush1.msra.mxu0 0.0
        %616 = vmatprep.subr.mxu0 0.0
        %617 = vmatpush1.msra.mxu0 0.0
        %618 = vmatprep.subr.mxu0 0.0
        %619 = vmatpush1.msra.mxu0 0.0
        %620 = vmatprep.subr.mxu0 0.0
        %621 = vmatpush1.msra.mxu0 0.0
        %622 = vmatprep.subr.mxu0 0.0
        %623 = vmatpush1.msra.mxu0 0.0
        %624 = vmatprep.mubr.f32.mxu0 0.0
        %625 = vmatmul.mubr.f32.gmra.mrb[0].mxu0 %v503
        %v626 = vpop.f32.mrb[0].mxu0
        %v627 = vadd.f32 0.0, %v626
        %v628 = vpop.f32.mrb[0].mxu0
        %629 = vmatprep.mubr.f32.mxu0 0.0
        %630 = vmatmul.mubr.f32.gmra.mrb[0].mxu0 %v506
        %v631 = vpop.f32.mrb[0].mxu0
        %v632 = vadd.f32 0.0, %v631
        %v633 = vpop.f32.mrb[0].mxu0
        %634 = vmatprep.mubr.f32.mxu0 0.0
        %635 = vmatmul.mubr.f32.gmra.mrb[0].mxu0 %v509
        %v636 = vpop.f32.mrb[0].mxu0
        %v637 = vadd.f32 0.0, %v636
        %v638 = vpop.f32.mrb[0].mxu0
        %639 = vmatprep.mubr.f32.mxu0 0.0
        %640 = vmatmul.mubr.f32.gmra.mrb[0].mxu0 %v512
        %v641 = vpop.f32.mrb[0].mxu0
        %v642 = vadd.f32 0.0, %v641
        %v643 = vpop.f32.mrb[0].mxu0
        %644 = vmatprep.mubr.f32.mxu0 0.0
        %645 = vmatmul.mubr.f32.gmra.mrb[0].mxu0 %v515
        %v646 = vpop.f32.mrb[0].mxu0
        %v647 = vadd.f32 0.0, %v646
        %v648 = vpop.f32.mrb[0].mxu0
        %649 = vmatprep.mubr.f32.mxu0 0.0
        %650 = vmatmul.mubr.f32.gmra.mrb[0].mxu0 %v518
        %v651 = vpop.f32.mrb[0].mxu0
        %v652 = vadd.f32 0.0, %v651
        %v653 = vpop.f32.mrb[0].mxu0
        %654 = vmatprep.mubr.f32.mxu0 0.0
        %655 = vmatmul.mubr.f32.gmra.mrb[0].mxu0 %v521
        %v656 = vpop.f32.mrb[0].mxu0
        %v657 = vadd.f32 0.0, %v656
        %v658 = vpop.f32.mrb[0].mxu0
        %659 = vmatprep.mubr.f32.mxu0 0.0
        %660 = vmatmul.mubr.f32.gmra.mrb[0].mxu0 %v524
        %v661 = vpop.f32.mrb[0].mxu0
        %v662 = vadd.f32 0.0, %v661
        %v663 = vpop.f32.mrb[0].mxu0
        %664 = vmatprep.mubr.f32.mxu0 0.0
        %665 = vmatmul.mubr.f32.gmra.mrb[0].mxu0 %v527
        %v666 = vpop.f32.mrb[0].mxu0
        %v667 = vadd.f32 0.0, %v666
        %v668 = vpop.f32.mrb[0].mxu0
        %669 = vmatprep.mubr.f32.mxu0 0.0
        %670 = vmatmul.mubr.f32.gmra.mrb[0].mxu0 %v530
        %v671 = vpop.f32.mrb[0].mxu0
        %v672 = vadd.f32 0.0, %v671
        %v673 = vpop.f32.mrb[0].mxu0
        %674 = vmatprep.mubr.f32.mxu0 0.0
        %675 = vmatmul.mubr.f32.gmra.mrb[0].mxu0 %v533
        %v676 = vpop.f32.mrb[0].mxu0
        %v677 = vadd.f32 0.0, %v676
        %v678 = vpop.f32.mrb[0].mxu0
        %679 = vmatprep.mubr.f32.mxu0 0.0
        %680 = vmatmul.mubr.f32.gmra.mrb[0].mxu0 %v536
        %v681 = vpop.f32.mrb[0].mxu0
        %v682 = vadd.f32 0.0, %v681
        %v683 = vpop.f32.mrb[0].mxu0
        %684 = vmatprep.mubr.f32.mxu0 0.0
        %685 = vmatmul.mubr.f32.gmra.mrb[0].mxu0 %v539
        %v686 = vpop.f32.mrb[0].mxu0
        %v687 = vadd.f32 0.0, %v686
        %v688 = vpop.f32.mrb[0].mxu0
        %689 = vmatprep.mubr.f32.mxu0 0.0
        %690 = vmatmul.mubr.f32.gmra.mrb[0].mxu0 %v542
        %v691 = vpop.f32.mrb[0].mxu0
        %v692 = vadd.f32 0.0, %v691
        %v693 = vpop.f32.mrb[0].mxu0
        %694 = vmatprep.mubr.f32.mxu0 0.0
        %695 = vmatmul.mubr.f32.gmra.mrb[0].mxu0 %v545
        %v696 = vpop.f32.mrb[0].mxu0
        %v697 = vadd.f32 0.0, %v696
        %v698 = vpop.f32.mrb[0].mxu0
        %699 = vmatprep.mubr.f32.mxu0 0.0
        %700 = vmatmul.mubr.f32.gmra.mrb[0].mxu0 %v548
        %v701 = vpop.f32.mrb[0].mxu0
        %v702 = vadd.f32 0.0, %v701
        %v703 = vpop.f32.mrb[0].mxu0
        %704 = vmatprep.mubr.f32.mxu0 0.0
        %705 = vmatmul.mubr.f32.gmra.mrb[0].mxu0 %v551
        %v706 = vpop.f32.mrb[0].mxu0
        %v707 = vadd.f32 0.0, %v706
        %v708 = vpop.f32.mrb[0].mxu0
        %709 = vmatprep.mubr.f32.mxu0 0.0
        %710 = vmatmul.mubr.f32.gmra.mrb[0].mxu0 %v554
        %v711 = vpop.f32.mrb[0].mxu0
        %v712 = vadd.f32 0.0, %v711
        %v713 = vpop.f32.mrb[0].mxu0
        %714 = vdwg.mxu0
        %vm715 = vcmp.gt.f32.partialorder %v627, 0.0
        %vm716 = vcmp.gt.f32.partialorder %v632, 0.0
        %vm717 = vcmp.gt.f32.partialorder %v637, 0.0
        %vm718 = vcmp.gt.f32.partialorder %v642, 0.0
        %vm719 = vcmp.gt.f32.partialorder %v647, 0.0
        %vm720 = vcmp.gt.f32.partialorder %v652, 0.0
        %vm721 = vcmp.gt.f32.partialorder %v657, 0.0
        %vm722 = vcmp.gt.f32.partialorder %v662, 0.0
        %vm723 = vcmp.gt.f32.partialorder %v667, 0.0
        %vm724 = vcmp.gt.f32.partialorder %v672, 0.0
        %vm725 = vcmp.gt.f32.partialorder %v677, 0.0
        %vm726 = vcmp.gt.f32.partialorder %v682, 0.0
        %vm727 = vcmp.gt.f32.partialorder %v687, 0.0
        %vm728 = vcmp.gt.f32.partialorder %v692, 0.0
        %vm729 = vcmp.gt.f32.partialorder %v697, 0.0
        %vm730 = vcmp.gt.f32.partialorder %v702, 0.0
        %vm731 = vcmp.gt.f32.partialorder %v707, 0.0
        %vm732 = vcmp.gt.f32.partialorder %v712, 0.0
        %v733 = vstv %s475
        %v734 = vmul.f32 %v733, %v627
        %v735 = vmul.f32 %v733, %v632
        %v736 = vmul.f32 %v733, %v637
        %v737 = vmul.f32 %v733, %v642
        %v738 = vmul.f32 %v733, %v647
        %v739 = vmul.f32 %v733, %v652
        %v740 = vmul.f32 %v733, %v657
        %v741 = vmul.f32 %v733, %v662
        %v742 = vmul.f32 %v733, %v667
        %v743 = vmul.f32 %v733, %v672
        %v744 = vmul.f32 %v733, %v677
        %v745 = vmul.f32 %v733, %v682
        %v746 = vmul.f32 %v733, %v687
        %v747 = vmul.f32 %v733, %v692
        %v748 = vmul.f32 %v733, %v697
        %v749 = vmul.f32 %v733, %v702
        %v750 = vmul.f32 %v733, %v707
        %v751 = vmul.f32 %v733, %v712
        %v752 = vsel %vm715, %v627, %v734
        %v753 = vsel %vm716, %v632, %v735
        %v754 = vsel %vm717, %v637, %v736
        %v755 = vsel %vm718, %v642, %v737
        %v756 = vsel %vm719, %v647, %v738
        %v757 = vsel %vm720, %v652, %v739
        %v758 = vsel %vm721, %v657, %v740
        %v759 = vsel %vm722, %v662, %v741
        %v760 = vsel %vm723, %v667, %v742
        %v761 = vsel %vm724, %v672, %v743
        %v762 = vsel %vm725, %v677, %v744
        %v763 = vsel %vm726, %v682, %v745
        %v764 = vsel %vm727, %v687, %v746
        %v765 = vsel %vm728, %v692, %v747
        %v766 = vsel %vm729, %v697, %v748
        %v767 = vsel %vm730, %v702, %v749
        %v768 = vsel %vm731, %v707, %v750
        %v769 = vsel %vm732, %v712, %v751
        %vm786 = vcmask 1046528
        %v787 = vrot.slane %v752, 1
        %v788 = vrot.slane %v753, 1
        %v789 = vsel %vm786, %v787, %v788
        %v790 = vrot.slane %v754, 1
        %v791 = vrot.slane %v755, 1
        %v792 = vsel %vm786, %v790, %v791
        %v793 = vrot.slane %v756, 1
        %v794 = vrot.slane %v757, 1
        %v795 = vsel %vm786, %v793, %v794
        %v796 = vrot.slane %v758, 1
        %v797 = vrot.slane %v759, 1
        %v798 = vsel %vm786, %v796, %v797
        %v799 = vrot.slane %v760, 1
        %v800 = vrot.slane %v761, 1
        %v801 = vsel %vm786, %v799, %v800
        %v802 = vrot.slane %v762, 1
        %v803 = vrot.slane %v763, 1
        %v804 = vsel %vm786, %v802, %v803
        %v805 = vrot.slane %v764, 1
        %v806 = vrot.slane %v765, 1
        %v807 = vsel %vm786, %v805, %v806
        %v808 = vrot.slane %v766, 1
        %v809 = vrot.slane %v767, 1
        %v810 = vsel %vm786, %v808, %v809
        %811 = vrot.lane.b32.xlu0 %v789, 8
        %v812 = vpop.permute.xlu0 %811
        %813 = vrot.lane.b32.xlu0 %v792, 8
        %v814 = vpop.permute.xlu0 %813
        %815 = vrot.lane.b32.xlu0 %v795, 8
        %v816 = vpop.permute.xlu0 %815
        %817 = vrot.lane.b32.xlu0 %v798, 8
        %v818 = vpop.permute.xlu0 %817
        %819 = vrot.lane.b32.xlu0 %v801, 8
        %v820 = vpop.permute.xlu0 %819
        %821 = vrot.lane.b32.xlu0 %v804, 8
        %v822 = vpop.permute.xlu0 %821
        %823 = vrot.lane.b32.xlu0 %v807, 8
        %v824 = vpop.permute.xlu0 %823
        %825 = vrot.lane.b32.xlu0 %v810, 8
        %v826 = vpop.permute.xlu0 %825
        %836 = vrot.lane.b32.xlu0 %v754, 16
        %v837 = vpop.permute.xlu0 %836
        %838 = vrot.lane.b32.xlu0 %v756, 16
        %v839 = vpop.permute.xlu0 %838
        %840 = vrot.lane.b32.xlu0 %v758, 16
        %v841 = vpop.permute.xlu0 %840
        %842 = vrot.lane.b32.xlu0 %v760, 16
        %v843 = vpop.permute.xlu0 %842
        %844 = vrot.lane.b32.xlu0 %v762, 16
        %v845 = vpop.permute.xlu0 %844
        %846 = vrot.lane.b32.xlu0 %v764, 16
        %v847 = vpop.permute.xlu0 %846
        %848 = vrot.lane.b32.xlu0 %v766, 16
        %v849 = vpop.permute.xlu0 %848
        %850 = vrot.lane.b32.xlu0 %v768, 16
        %v851 = vpop.permute.xlu0 %850
        %v861 = vrot.slane %v768, 1
        %v862 = vrot.slane %v769, 1
        %v863 = vsel %vm786, %v861, %v862
        %864 = vrot.lane.b32.xlu0 %v792, 24
        %v865 = vpop.permute.xlu0 %864
        %866 = vrot.lane.b32.xlu0 %v795, 24
        %v867 = vpop.permute.xlu0 %866
        %868 = vrot.lane.b32.xlu0 %v798, 24
        %v869 = vpop.permute.xlu0 %868
        %870 = vrot.lane.b32.xlu0 %v801, 24
        %v871 = vpop.permute.xlu0 %870
        %872 = vrot.lane.b32.xlu0 %v804, 24
        %v873 = vpop.permute.xlu0 %872
        %874 = vrot.lane.b32.xlu0 %v807, 24
        %v875 = vpop.permute.xlu0 %874
        %876 = vrot.lane.b32.xlu0 %v810, 24
        %v877 = vpop.permute.xlu0 %876
        %878 = vrot.lane.b32.xlu0 %v863, 24
        %v879 = vpop.permute.xlu0 %878
        %vm888 = vcmask 64512
        %v889 = vsel %vm888, %v752, %v812
        %v890 = vsel %vm888, %v754, %v814
        %v891 = vsel %vm888, %v756, %v816
        %v892 = vsel %vm888, %v758, %v818
        %v893 = vsel %vm888, %v760, %v820
        %v894 = vsel %vm888, %v762, %v822
        %v895 = vsel %vm888, %v764, %v824
        %v896 = vsel %vm888, %v766, %v826
        %vm897 = vcmask 130048
        %v898 = vsel %vm897, %v889, %v837
        %v899 = vsel %vm897, %v890, %v839
        %v900 = vsel %vm897, %v891, %v841
        %v901 = vsel %vm897, %v892, %v843
        %v902 = vsel %vm897, %v893, %v845
        %v903 = vsel %vm897, %v894, %v847
        %v904 = vsel %vm897, %v895, %v849
        %v905 = vsel %vm897, %v896, %v851
        %vm906 = vcmask 195584
        %v907 = vsel %vm906, %v898, %v865
        %v908 = vsel %vm906, %v899, %v867
        %v909 = vsel %vm906, %v900, %v869
        %v910 = vsel %vm906, %v901, %v871
        %v911 = vsel %vm906, %v902, %v873
        %v912 = vsel %vm906, %v903, %v875
        %v913 = vsel %vm906, %v904, %v877
        %v914 = vsel %vm906, %v905, %v879
        %v915 = vld [vmem:[%s3] sm:$0xff]
        %v916 = vld [vmem:[%s3 + $0x8] sm:$0xff]
        %v917 = vld [vmem:[%s3 + $0x10] sm:$0xff]
        %v918 = vld [vmem:[%s3 + $0x18] sm:$0xff]
        %v919 = vld [vmem:[%s4] sm:$0x1]
        %v921 = vlaneseq
        %v922 = vshrl.u32 %v921, 7
        %v923 = vsub.s32 0, %v922
        %v924 = vrot.slane %v919, %v923
        %vm926 = vcmask 261120
        %v928 = vsel %vm926, %v907, 0
        %v931 = vsel %vm926, %v908, 0
        %v934 = vsel %vm926, %v909, 0
        %v937 = vsel %vm926, %v910, 0
        %v940 = vsel %vm926, %v911, 0
        %v943 = vsel %vm926, %v912, 0
        %v946 = vsel %vm926, %v913, 0
        %v949 = vsel %vm926, %v914, 0
        %951 = vmatprep.subr.mxu0 0.0
        %952 = vmatpush1.msra.mxu0 %v915
        %953 = vmatprep.subr.mxu0 0.0
        %954 = vmatpush1.msra.mxu0 %v916
        %955 = vmatprep.subr.mxu0 0.0
        %956 = vmatpush1.msra.mxu0 %v917
        %957 = vmatprep.subr.mxu0 0.0
        %958 = vmatpush1.msra.mxu0 %v918
        %959 = vmatprep.subr.mxu0 0.0
        %960 = vmatpush1.msra.mxu0 0.0
        %961 = vmatprep.subr.mxu0 0.0
        %962 = vmatpush1.msra.mxu0 0.0
        %963 = vmatprep.subr.mxu0 0.0
        %964 = vmatpush1.msra.mxu0 0.0
        %965 = vmatprep.subr.mxu0 0.0
        %966 = vmatpush1.msra.mxu0 0.0
        %967 = vmatprep.subr.mxu0 0.0
        %968 = vmatpush1.msra.mxu0 0.0
        %969 = vmatprep.subr.mxu0 0.0
        %970 = vmatpush1.msra.mxu0 0.0
        %971 = vmatprep.subr.mxu0 0.0
        %972 = vmatpush1.msra.mxu0 0.0
        %973 = vmatprep.subr.mxu0 0.0
        %974 = vmatpush1.msra.mxu0 0.0
        %975 = vmatprep.subr.mxu0 0.0
        %976 = vmatpush1.msra.mxu0 0.0
        %977 = vmatprep.subr.mxu0 0.0
        %978 = vmatpush1.msra.mxu0 0.0
        %979 = vmatprep.subr.mxu0 0.0
        %980 = vmatpush1.msra.mxu0 0.0
        %981 = vmatprep.subr.mxu0 0.0
        %982 = vmatpush1.msra.mxu0 0.0
        %983 = vmatprep.subr.mxu0 0.0
        %984 = vmatpush1.msra.mxu0 0.0
        %985 = vmatprep.subr.mxu0 0.0
        %986 = vmatpush1.msra.mxu0 0.0
        %987 = vmatprep.subr.mxu0 0.0
        %988 = vmatpush1.msra.mxu0 0.0
        %989 = vmatprep.subr.mxu0 0.0
        %990 = vmatpush1.msra.mxu0 0.0
        %991 = vmatprep.subr.mxu0 0.0
        %992 = vmatpush1.msra.mxu0 0.0
        %993 = vmatprep.subr.mxu0 0.0
        %994 = vmatpush1.msra.mxu0 0.0
        %995 = vmatprep.subr.mxu0 0.0
        %996 = vmatpush1.msra.mxu0 0.0
        %997 = vmatprep.subr.mxu0 0.0
        %998 = vmatpush1.msra.mxu0 0.0
        %999 = vmatprep.subr.mxu0 0.0
        %1000 = vmatpush1.msra.mxu0 0.0
        %1001 = vmatprep.subr.mxu0 0.0
        %1002 = vmatpush1.msra.mxu0 0.0
        %1003 = vmatprep.subr.mxu0 0.0
        %1004 = vmatpush1.msra.mxu0 0.0
        %1005 = vmatprep.subr.mxu0 0.0
        %1006 = vmatpush1.msra.mxu0 0.0
        %1007 = vmatprep.subr.mxu0 0.0
        %1008 = vmatpush1.msra.mxu0 0.0
        %1009 = vmatprep.subr.mxu0 0.0
        %1010 = vmatpush1.msra.mxu0 0.0
        %1011 = vmatprep.subr.mxu0 0.0
        %1012 = vmatpush1.msra.mxu0 0.0
        %1013 = vmatprep.subr.mxu0 0.0
        %1014 = vmatpush1.msra.mxu0 0.0
        %1015 = vmatprep.mubr.f32.mxu0 0.0
        %1016 = vmatmul.mubr.f32.gmra.mrb[0].mxu0 %v928
        %v1017 = vpop.f32.mrb[0].mxu0
        %v1018 = vadd.f32 %v924, %v1017
        %v1019 = vpop.f32.mrb[0].mxu0
        %1020 = vmatprep.mubr.f32.mxu0 0.0
        %1021 = vmatmul.mubr.f32.gmra.mrb[0].mxu0 %v931
        %v1022 = vpop.f32.mrb[0].mxu0
        %v1023 = vadd.f32 %v924, %v1022
        %v1024 = vpop.f32.mrb[0].mxu0
        %1025 = vmatprep.mubr.f32.mxu0 0.0
        %1026 = vmatmul.mubr.f32.gmra.mrb[0].mxu0 %v934
        %v1027 = vpop.f32.mrb[0].mxu0
        %v1028 = vadd.f32 %v924, %v1027
        %v1029 = vpop.f32.mrb[0].mxu0
        %1030 = vmatprep.mubr.f32.mxu0 0.0
        %1031 = vmatmul.mubr.f32.gmra.mrb[0].mxu0 %v937
        %v1032 = vpop.f32.mrb[0].mxu0
        %v1033 = vadd.f32 %v924, %v1032
        %v1034 = vpop.f32.mrb[0].mxu0
        %1035 = vmatprep.mubr.f32.mxu0 0.0
        %1036 = vmatmul.mubr.f32.gmra.mrb[0].mxu0 %v940
        %v1037 = vpop.f32.mrb[0].mxu0
        %v1038 = vadd.f32 %v924, %v1037
        %v1039 = vpop.f32.mrb[0].mxu0
        %1040 = vmatprep.mubr.f32.mxu0 0.0
        %1041 = vmatmul.mubr.f32.gmra.mrb[0].mxu0 %v943
        %v1042 = vpop.f32.mrb[0].mxu0
        %v1043 = vadd.f32 %v924, %v1042
        %v1044 = vpop.f32.mrb[0].mxu0
        %1045 = vmatprep.mubr.f32.mxu0 0.0
        %1046 = vmatmul.mubr.f32.gmra.mrb[0].mxu0 %v946
        %v1047 = vpop.f32.mrb[0].mxu0
        %v1048 = vadd.f32 %v924, %v1047
        %v1049 = vpop.f32.mrb[0].mxu0
        %1050 = vmatprep.mubr.f32.mxu0 0.0
        %1051 = vmatmul.mubr.f32.gmra.mrb[0].mxu0 %v949
        %v1052 = vpop.f32.mrb[0].mxu0
        %v1053 = vadd.f32 %v924, %v1052
        %v1054 = vpop.f32.mrb[0].mxu0
        %1055 = vdwg.mxu0
        %vm1056 = vcmp.gt.f32.partialorder %v1018, 0.0
        %vm1057 = vcmp.gt.f32.partialorder %v1023, 0.0
        %vm1058 = vcmp.gt.f32.partialorder %v1028, 0.0
        %vm1059 = vcmp.gt.f32.partialorder %v1033, 0.0
        %vm1060 = vcmp.gt.f32.partialorder %v1038, 0.0
        %vm1061 = vcmp.gt.f32.partialorder %v1043, 0.0
        %vm1062 = vcmp.gt.f32.partialorder %v1048, 0.0
        %vm1063 = vcmp.gt.f32.partialorder %v1053, 0.0
        %v1064 = vstv %s476
        %v1065 = vmul.f32 %v1064, %v1018
        %v1066 = vmul.f32 %v1064, %v1023
        %v1067 = vmul.f32 %v1064, %v1028
        %v1068 = vmul.f32 %v1064, %v1033
        %v1069 = vmul.f32 %v1064, %v1038
        %v1070 = vmul.f32 %v1064, %v1043
        %v1071 = vmul.f32 %v1064, %v1048
        %v1072 = vmul.f32 %v1064, %v1053
        %v1073 = vsel %vm1056, %v1018, %v1065
        %v1074 = vsel %vm1057, %v1023, %v1066
        %v1075 = vsel %vm1058, %v1028, %v1067
        %v1076 = vsel %vm1059, %v1033, %v1068
        %v1077 = vsel %vm1060, %v1038, %v1069
        %v1078 = vsel %vm1061, %v1043, %v1070
        %v1079 = vsel %vm1062, %v1048, %v1071
        %v1080 = vsel %vm1063, %v1053, %v1072
        %v1081 = vld [vmem:[%s5] sm:$0x3]
        %v1082 = vld [vmem:[%s6] sm:$0x1]
        %v1084 = vlaneseq
        %v1085 = vshrl.u32 %v1084, 7
        %v1086 = vsub.s32 0, %v1085
        %v1087 = vrot.slane %v1082, %v1086
        %vm1089 = vcmask 15360
        %v1091 = vsel %vm1089, %v1073, 0
        %v1094 = vsel %vm1089, %v1074, 0
        %v1097 = vsel %vm1089, %v1075, 0
        %v1100 = vsel %vm1089, %v1076, 0
        %v1103 = vsel %vm1089, %v1077, 0
        %v1106 = vsel %vm1089, %v1078, 0
        %v1109 = vsel %vm1089, %v1079, 0
        %v1112 = vsel %vm1089, %v1080, 0
        %vm1114 = vcmask 1041408
        %v1116 = vsel %vm1114, %v1081, 0
        %1118 = vmatprep.subr.mxu0 0.0
        %1119 = vmatpush1.msra.mxu0 %v1116
        %1120 = vmatprep.subr.mxu0 0.0
        %1121 = vmatpush1.msra.mxu0 0.0
        %1122 = vmatprep.subr.mxu0 0.0
        %1123 = vmatpush1.msra.mxu0 0.0
        %1124 = vmatprep.subr.mxu0 0.0
        %1125 = vmatpush1.msra.mxu0 0.0
        %1126 = vmatprep.subr.mxu0 0.0
        %1127 = vmatpush1.msra.mxu0 0.0
        %1128 = vmatprep.subr.mxu0 0.0
        %1129 = vmatpush1.msra.mxu0 0.0
        %1130 = vmatprep.subr.mxu0 0.0
        %1131 = vmatpush1.msra.mxu0 0.0
        %1132 = vmatprep.subr.mxu0 0.0
        %1133 = vmatpush1.msra.mxu0 0.0
        %1134 = vmatprep.subr.mxu0 0.0
        %1135 = vmatpush1.msra.mxu0 0.0
        %1136 = vmatprep.subr.mxu0 0.0
        %1137 = vmatpush1.msra.mxu0 0.0
        %1138 = vmatprep.subr.mxu0 0.0
        %1139 = vmatpush1.msra.mxu0 0.0
        %1140 = vmatprep.subr.mxu0 0.0
        %1141 = vmatpush1.msra.mxu0 0.0
        %1142 = vmatprep.subr.mxu0 0.0
        %1143 = vmatpush1.msra.mxu0 0.0
        %1144 = vmatprep.subr.mxu0 0.0
        %1145 = vmatpush1.msra.mxu0 0.0
        %1146 = vmatprep.subr.mxu0 0.0
        %1147 = vmatpush1.msra.mxu0 0.0
        %1148 = vmatprep.subr.mxu0 0.0
        %1149 = vmatpush1.msra.mxu0 0.0
        %1150 = vmatprep.subr.mxu0 0.0
        %1151 = vmatpush1.msra.mxu0 0.0
        %1152 = vmatprep.subr.mxu0 0.0
        %1153 = vmatpush1.msra.mxu0 0.0
        %1154 = vmatprep.subr.mxu0 0.0
        %1155 = vmatpush1.msra.mxu0 0.0
        %1156 = vmatprep.subr.mxu0 0.0
        %1157 = vmatpush1.msra.mxu0 0.0
        %1158 = vmatprep.subr.mxu0 0.0
        %1159 = vmatpush1.msra.mxu0 0.0
        %1160 = vmatprep.subr.mxu0 0.0
        %1161 = vmatpush1.msra.mxu0 0.0
        %1162 = vmatprep.subr.mxu0 0.0
        %1163 = vmatpush1.msra.mxu0 0.0
        %1164 = vmatprep.subr.mxu0 0.0
        %1165 = vmatpush1.msra.mxu0 0.0
        %1166 = vmatprep.subr.mxu0 0.0
        %1167 = vmatpush1.msra.mxu0 0.0
        %1168 = vmatprep.subr.mxu0 0.0
        %1169 = vmatpush1.msra.mxu0 0.0
        %1170 = vmatprep.subr.mxu0 0.0
        %1171 = vmatpush1.msra.mxu0 0.0
        %1172 = vmatprep.subr.mxu0 0.0
        %1173 = vmatpush1.msra.mxu0 0.0
        %1174 = vmatprep.subr.mxu0 0.0
        %1175 = vmatpush1.msra.mxu0 0.0
        %1176 = vmatprep.subr.mxu0 0.0
        %1177 = vmatpush1.msra.mxu0 0.0
        %1178 = vmatprep.subr.mxu0 0.0
        %1179 = vmatpush1.msra.mxu0 0.0
        %1180 = vmatprep.subr.mxu0 0.0
        %1181 = vmatpush1.msra.mxu0 0.0
        %1182 = vmatprep.mubr.f32.mxu0 0.0
        %1183 = vmatmul.mubr.f32.gmra.mrb[0].mxu0 %v1091
        %v1184 = vpop.f32.mrb[0].mxu0
        %v1185 = vadd.f32 %v1087, %v1184
        %v1186 = vpop.f32.mrb[0].mxu0
        %1187 = vmatprep.mubr.f32.mxu0 0.0
        %1188 = vmatmul.mubr.f32.gmra.mrb[0].mxu0 %v1094
        %v1189 = vpop.f32.mrb[0].mxu0
        %v1190 = vadd.f32 %v1087, %v1189
        %v1191 = vpop.f32.mrb[0].mxu0
        %1192 = vmatprep.mubr.f32.mxu0 0.0
        %1193 = vmatmul.mubr.f32.gmra.mrb[0].mxu0 %v1097
        %v1194 = vpop.f32.mrb[0].mxu0
        %v1195 = vadd.f32 %v1087, %v1194
        %v1196 = vpop.f32.mrb[0].mxu0
        %1197 = vmatprep.mubr.f32.mxu0 0.0
        %1198 = vmatmul.mubr.f32.gmra.mrb[0].mxu0 %v1100
        %v1199 = vpop.f32.mrb[0].mxu0
        %v1200 = vadd.f32 %v1087, %v1199
        %v1201 = vpop.f32.mrb[0].mxu0
        %1202 = vmatprep.mubr.f32.mxu0 0.0
        %1203 = vmatmul.mubr.f32.gmra.mrb[0].mxu0 %v1103
        %v1204 = vpop.f32.mrb[0].mxu0
        %v1205 = vadd.f32 %v1087, %v1204
        %v1206 = vpop.f32.mrb[0].mxu0
        %1207 = vmatprep.mubr.f32.mxu0 0.0
        %1208 = vmatmul.mubr.f32.gmra.mrb[0].mxu0 %v1106
        %v1209 = vpop.f32.mrb[0].mxu0
        %v1210 = vadd.f32 %v1087, %v1209
        %v1211 = vpop.f32.mrb[0].mxu0
        %1212 = vmatprep.mubr.f32.mxu0 0.0
        %1213 = vmatmul.mubr.f32.gmra.mrb[0].mxu0 %v1109
        %v1214 = vpop.f32.mrb[0].mxu0
        %v1215 = vadd.f32 %v1087, %v1214
        %v1216 = vpop.f32.mrb[0].mxu0
        %1217 = vmatprep.mubr.f32.mxu0 0.0
        %1218 = vmatmul.mubr.f32.gmra.mrb[0].mxu0 %v1112
        %v1219 = vpop.f32.mrb[0].mxu0
        %v1220 = vadd.f32 %v1087, %v1219
        %v1221 = vpop.f32.mrb[0].mxu0
        %1222 = vdwg.mxu0
        %v1223 = vrot.slane %v478, 7
        %v1224 = vrot.slane %v480, 7
        %v1225 = vrot.slane %v482, 7
        %v1226 = vrot.slane %v484, 7
        %v1227 = vrot.slane %v486, 7
        %v1228 = vrot.slane %v488, 7
        %v1229 = vrot.slane %v490, 7
        %v1230 = vrot.slane %v492, 7
        %1231 = vrot.lane.b32.xlu0 %v1223, 119
        %v1232 = vpop.permute.xlu0 %1231
        %1233 = vrot.lane.b32.xlu0 %v1224, 119
        %v1234 = vpop.permute.xlu0 %1233
        %1235 = vrot.lane.b32.xlu0 %v1225, 119
        %v1236 = vpop.permute.xlu0 %1235
        %1237 = vrot.lane.b32.xlu0 %v1226, 119
        %v1238 = vpop.permute.xlu0 %1237
        %1239 = vrot.lane.b32.xlu0 %v1227, 119
        %v1240 = vpop.permute.xlu0 %1239
        %1241 = vrot.lane.b32.xlu0 %v1228, 119
        %v1242 = vpop.permute.xlu0 %1241
        %1243 = vrot.lane.b32.xlu0 %v1229, 119
        %v1244 = vpop.permute.xlu0 %1243
        %1245 = vrot.lane.b32.xlu0 %v1230, 119
        %v1246 = vpop.permute.xlu0 %1245
        %vm1255 = vcmp.gt.f32.partialorder %v478, %v1232
        %vm1256 = vcmp.gt.f32.partialorder %v479, %v1232
        %vm1257 = vcmp.gt.f32.partialorder %v480, %v1234
        %vm1258 = vcmp.gt.f32.partialorder %v481, %v1234
        %vm1259 = vcmp.gt.f32.partialorder %v482, %v1236
        %vm1260 = vcmp.gt.f32.partialorder %v483, %v1236
        %vm1261 = vcmp.gt.f32.partialorder %v484, %v1238
        %vm1262 = vcmp.gt.f32.partialorder %v485, %v1238
        %vm1263 = vcmp.gt.f32.partialorder %v486, %v1240
        %vm1264 = vcmp.gt.f32.partialorder %v487, %v1240
        %vm1265 = vcmp.gt.f32.partialorder %v488, %v1242
        %vm1266 = vcmp.gt.f32.partialorder %v489, %v1242
        %vm1267 = vcmp.gt.f32.partialorder %v490, %v1244
        %vm1268 = vcmp.gt.f32.partialorder %v491, %v1244
        %vm1269 = vcmp.gt.f32.partialorder %v492, %v1246
        %vm1270 = vcmp.gt.f32.partialorder %v493, %v1246
        %v1271 = vsel %vm1255, %v478, %v1232
        %v1272 = vsel %vm1256, %v479, %v1232
        %v1273 = vsel %vm1257, %v480, %v1234
        %v1274 = vsel %vm1258, %v481, %v1234
        %v1275 = vsel %vm1259, %v482, %v1236
        %v1276 = vsel %vm1260, %v483, %v1236
        %v1277 = vsel %vm1261, %v484, %v1238
        %v1278 = vsel %vm1262, %v485, %v1238
        %v1279 = vsel %vm1263, %v486, %v1240
        %v1280 = vsel %vm1264, %v487, %v1240
        %v1281 = vsel %vm1265, %v488, %v1242
        %v1282 = vsel %vm1266, %v489, %v1242
        %v1283 = vsel %vm1267, %v490, %v1244
        %v1284 = vsel %vm1268, %v491, %v1244
        %v1285 = vsel %vm1269, %v492, %v1246
        %v1286 = vsel %vm1270, %v493, %v1246
        %v1287 = vsel %vm1255, 1, 0
        %v1288 = vsel %vm1256, 1, 0
        %v1289 = vsel %vm1257, 1, 0
        %v1290 = vsel %vm1258, 1, 0
        %v1291 = vsel %vm1259, 1, 0
        %v1292 = vsel %vm1260, 1, 0
        %v1293 = vsel %vm1261, 1, 0
        %v1294 = vsel %vm1262, 1, 0
        %v1295 = vsel %vm1263, 1, 0
        %v1296 = vsel %vm1264, 1, 0
        %v1297 = vsel %vm1265, 1, 0
        %v1298 = vsel %vm1266, 1, 0
        %v1299 = vsel %vm1267, 1, 0
        %v1300 = vsel %vm1268, 1, 0
        %v1301 = vsel %vm1269, 1, 0
        %v1302 = vsel %vm1270, 1, 0
        %v1319 = vrot.slane %v1271, 1
        %v1320 = vrot.slane %v1272, 1
        %v1321 = vsel %vm786, %v1319, %v1320
        %v1322 = vrot.slane %v1273, 1
        %v1323 = vrot.slane %v1274, 1
        %v1324 = vsel %vm786, %v1322, %v1323
        %v1325 = vrot.slane %v1275, 1
        %v1326 = vrot.slane %v1276, 1
        %v1327 = vsel %vm786, %v1325, %v1326
        %v1328 = vrot.slane %v1277, 1
        %v1329 = vrot.slane %v1278, 1
        %v1330 = vsel %vm786, %v1328, %v1329
        %v1331 = vrot.slane %v1279, 1
        %v1332 = vrot.slane %v1280, 1
        %v1333 = vsel %vm786, %v1331, %v1332
        %v1334 = vrot.slane %v1281, 1
        %v1335 = vrot.slane %v1282, 1
        %v1336 = vsel %vm786, %v1334, %v1335
        %v1337 = vrot.slane %v1283, 1
        %v1338 = vrot.slane %v1284, 1
        %v1339 = vsel %vm786, %v1337, %v1338
        %v1340 = vrot.slane %v1285, 1
        %v1341 = vrot.slane %v1286, 1
        %v1342 = vsel %vm786, %v1340, %v1341
        %1343 = vrot.lane.b32.xlu0 %v1321, 119
        %v1344 = vpop.permute.xlu0 %1343
        %1345 = vrot.lane.b32.xlu0 %v1324, 119
        %v1346 = vpop.permute.xlu0 %1345
        %1347 = vrot.lane.b32.xlu0 %v1327, 119
        %v1348 = vpop.permute.xlu0 %1347
        %1349 = vrot.lane.b32.xlu0 %v1330, 119
        %v1350 = vpop.permute.xlu0 %1349
        %1351 = vrot.lane.b32.xlu0 %v1333, 119
        %v1352 = vpop.permute.xlu0 %1351
        %1353 = vrot.lane.b32.xlu0 %v1336, 119
        %v1354 = vpop.permute.xlu0 %1353
        %1355 = vrot.lane.b32.xlu0 %v1339, 119
        %v1356 = vpop.permute.xlu0 %1355
        %1357 = vrot.lane.b32.xlu0 %v1342, 119
        %v1358 = vpop.permute.xlu0 %1357
        %vm1367 = vcmp.gt.f32.partialorder %v480, %v1344
        %vm1368 = vcmp.gt.f32.partialorder %v482, %v1346
        %vm1369 = vcmp.gt.f32.partialorder %v484, %v1348
        %vm1370 = vcmp.gt.f32.partialorder %v486, %v1350
        %vm1371 = vcmp.gt.f32.partialorder %v488, %v1352
        %vm1372 = vcmp.gt.f32.partialorder %v490, %v1354
        %vm1373 = vcmp.gt.f32.partialorder %v492, %v1356
        %vm1374 = vcmp.gt.f32.partialorder %v494, %v1358
        %v1375 = vsel %vm1367, %v480, %v1344
        %v1376 = vsel %vm1368, %v482, %v1346
        %v1377 = vsel %vm1369, %v484, %v1348
        %v1378 = vsel %vm1370, %v486, %v1350
        %v1379 = vsel %vm1371, %v488, %v1352
        %v1380 = vsel %vm1372, %v490, %v1354
        %v1381 = vsel %vm1373, %v492, %v1356
        %v1382 = vsel %vm1374, %v494, %v1358
        %v1383 = vrot.slane %v1287, 1
        %v1384 = vrot.slane %v1288, 1
        %v1385 = vsel %vm786, %v1383, %v1384
        %v1386 = vrot.slane %v1289, 1
        %v1387 = vrot.slane %v1290, 1
        %v1388 = vsel %vm786, %v1386, %v1387
        %v1389 = vrot.slane %v1291, 1
        %v1390 = vrot.slane %v1292, 1
        %v1391 = vsel %vm786, %v1389, %v1390
        %v1392 = vrot.slane %v1293, 1
        %v1393 = vrot.slane %v1294, 1
        %v1394 = vsel %vm786, %v1392, %v1393
        %v1395 = vrot.slane %v1295, 1
        %v1396 = vrot.slane %v1296, 1
        %v1397 = vsel %vm786, %v1395, %v1396
        %v1398 = vrot.slane %v1297, 1
        %v1399 = vrot.slane %v1298, 1
        %v1400 = vsel %vm786, %v1398, %v1399
        %v1401 = vrot.slane %v1299, 1
        %v1402 = vrot.slane %v1300, 1
        %v1403 = vsel %vm786, %v1401, %v1402
        %v1404 = vrot.slane %v1301, 1
        %v1405 = vrot.slane %v1302, 1
        %v1406 = vsel %vm786, %v1404, %v1405
        %1407 = vrot.lane.b32.xlu0 %v1385, 119
        %v1408 = vpop.permute.xlu0 %1407
        %1409 = vrot.lane.b32.xlu0 %v1388, 119
        %v1410 = vpop.permute.xlu0 %1409
        %1411 = vrot.lane.b32.xlu0 %v1391, 119
        %v1412 = vpop.permute.xlu0 %1411
        %1413 = vrot.lane.b32.xlu0 %v1394, 119
        %v1414 = vpop.permute.xlu0 %1413
        %1415 = vrot.lane.b32.xlu0 %v1397, 119
        %v1416 = vpop.permute.xlu0 %1415
        %1417 = vrot.lane.b32.xlu0 %v1400, 119
        %v1418 = vpop.permute.xlu0 %1417
        %1419 = vrot.lane.b32.xlu0 %v1403, 119
        %v1420 = vpop.permute.xlu0 %1419
        %1421 = vrot.lane.b32.xlu0 %v1406, 119
        %v1422 = vpop.permute.xlu0 %1421
        %v1423 = vsel %vm1367, 16, %v1408
        %v1424 = vsel %vm1368, 16, %v1410
        %v1425 = vsel %vm1369, 16, %v1412
        %v1426 = vsel %vm1370, 16, %v1414
        %v1427 = vsel %vm1371, 16, %v1416
        %v1428 = vsel %vm1372, 16, %v1418
        %v1429 = vsel %vm1373, 16, %v1420
        %v1430 = vsel %vm1374, 16, %v1422
        %v1439 = vrot.slane %v1375, 7
        %v1440 = vrot.slane %v1376, 7
        %v1441 = vrot.slane %v1377, 7
        %v1442 = vrot.slane %v1378, 7
        %v1443 = vrot.slane %v1379, 7
        %v1444 = vrot.slane %v1380, 7
        %v1445 = vrot.slane %v1381, 7
        %v1446 = vrot.slane %v1382, 7
        %1447 = vrot.lane.b32.xlu0 %v1439, 119
        %v1448 = vpop.permute.xlu0 %1447
        %1449 = vrot.lane.b32.xlu0 %v1440, 119
        %v1450 = vpop.permute.xlu0 %1449
        %1451 = vrot.lane.b32.xlu0 %v1441, 119
        %v1452 = vpop.permute.xlu0 %1451
        %1453 = vrot.lane.b32.xlu0 %v1442, 119
        %v1454 = vpop.permute.xlu0 %1453
        %1455 = vrot.lane.b32.xlu0 %v1443, 119
        %v1456 = vpop.permute.xlu0 %1455
        %1457 = vrot.lane.b32.xlu0 %v1444, 119
        %v1458 = vpop.permute.xlu0 %1457
        %1459 = vrot.lane.b32.xlu0 %v1445, 119
        %v1460 = vpop.permute.xlu0 %1459
        %1461 = vrot.lane.b32.xlu0 %v1446, 119
        %v1462 = vpop.permute.xlu0 %1461
        %vm1471 = vcmp.gt.f32.partialorder %v480, %v1448
        %vm1472 = vcmp.gt.f32.partialorder %v481, %v1448
        %vm1473 = vcmp.gt.f32.partialorder %v482, %v1450
        %vm1474 = vcmp.gt.f32.partialorder %v483, %v1450
        %vm1475 = vcmp.gt.f32.partialorder %v484, %v1452
        %vm1476 = vcmp.gt.f32.partialorder %v485, %v1452
        %vm1477 = vcmp.gt.f32.partialorder %v486, %v1454
        %vm1478 = vcmp.gt.f32.partialorder %v487, %v1454
        %vm1479 = vcmp.gt.f32.partialorder %v488, %v1456
        %vm1480 = vcmp.gt.f32.partialorder %v489, %v1456
        %vm1481 = vcmp.gt.f32.partialorder %v490, %v1458
        %vm1482 = vcmp.gt.f32.partialorder %v491, %v1458
        %vm1483 = vcmp.gt.f32.partialorder %v492, %v1460
        %vm1484 = vcmp.gt.f32.partialorder %v493, %v1460
        %vm1485 = vcmp.gt.f32.partialorder %v494, %v1462
        %vm1486 = vcmp.gt.f32.partialorder %v495, %v1462
        %v1487 = vsel %vm1471, %v480, %v1448
        %v1488 = vsel %vm1472, %v481, %v1448
        %v1489 = vsel %vm1473, %v482, %v1450
        %v1490 = vsel %vm1474, %v483, %v1450
        %v1491 = vsel %vm1475, %v484, %v1452
        %v1492 = vsel %vm1476, %v485, %v1452
        %v1493 = vsel %vm1477, %v486, %v1454
        %v1494 = vsel %vm1478, %v487, %v1454
        %v1495 = vsel %vm1479, %v488, %v1456
        %v1496 = vsel %vm1480, %v489, %v1456
        %v1497 = vsel %vm1481, %v490, %v1458
        %v1498 = vsel %vm1482, %v491, %v1458
        %v1499 = vsel %vm1483, %v492, %v1460
        %v1500 = vsel %vm1484, %v493, %v1460
        %v1501 = vsel %vm1485, %v494, %v1462
        %v1502 = vsel %vm1486, %v495, %v1462
        %v1503 = vrot.slane %v1423, 7
        %v1504 = vrot.slane %v1424, 7
        %v1505 = vrot.slane %v1425, 7
        %v1506 = vrot.slane %v1426, 7
        %v1507 = vrot.slane %v1427, 7
        %v1508 = vrot.slane %v1428, 7
        %v1509 = vrot.slane %v1429, 7
        %v1510 = vrot.slane %v1430, 7
        %1511 = vrot.lane.b32.xlu0 %v1503, 119
        %v1512 = vpop.permute.xlu0 %1511
        %1513 = vrot.lane.b32.xlu0 %v1504, 119
        %v1514 = vpop.permute.xlu0 %1513
        %1515 = vrot.lane.b32.xlu0 %v1505, 119
        %v1516 = vpop.permute.xlu0 %1515
        %1517 = vrot.lane.b32.xlu0 %v1506, 119
        %v1518 = vpop.permute.xlu0 %1517
        %1519 = vrot.lane.b32.xlu0 %v1507, 119
        %v1520 = vpop.permute.xlu0 %1519
        %1521 = vrot.lane.b32.xlu0 %v1508, 119
        %v1522 = vpop.permute.xlu0 %1521
        %1523 = vrot.lane.b32.xlu0 %v1509, 119
        %v1524 = vpop.permute.xlu0 %1523
        %1525 = vrot.lane.b32.xlu0 %v1510, 119
        %v1526 = vpop.permute.xlu0 %1525
        %v1527 = vsel %vm1471, 17, %v1512
        %v1528 = vsel %vm1472, 17, %v1512
        %v1529 = vsel %vm1473, 17, %v1514
        %v1530 = vsel %vm1474, 17, %v1514
        %v1531 = vsel %vm1475, 17, %v1516
        %v1532 = vsel %vm1476, 17, %v1516
        %v1533 = vsel %vm1477, 17, %v1518
        %v1534 = vsel %vm1478, 17, %v1518
        %v1535 = vsel %vm1479, 17, %v1520
        %v1536 = vsel %vm1480, 17, %v1520
        %v1537 = vsel %vm1481, 17, %v1522
        %v1538 = vsel %vm1482, 17, %v1522
        %v1539 = vsel %vm1483, 17, %v1524
        %v1540 = vsel %vm1484, 17, %v1524
        %v1541 = vsel %vm1485, 17, %v1526
        %v1542 = vsel %vm1486, 17, %v1526
        %s1543 = smul.u32 %s36, 8
        %v1544 = vlaneseq
        %v1545 = vshrl.u32 %v1544, 7
        %v1546 = vstv %s1543
        %v1547 = vadd.s32 %v1546, 1
        %v1548 = vadd.s32 %v1546, 2
        %v1549 = vadd.s32 %v1546, 3
        %v1550 = vadd.s32 %v1546, 4
        %v1551 = vadd.s32 %v1546, 5
        %v1552 = vadd.s32 %v1546, 6
        %v1553 = vadd.s32 %v1546, 7
        %v1554 = vmul.u32 %v1546, 2
        %v1555 = vmul.u32 %v1547, 2
        %v1556 = vmul.u32 %v1548, 2
        %v1557 = vmul.u32 %v1549, 2
        %v1558 = vmul.u32 %v1550, 2
        %v1559 = vmul.u32 %v1551, 2
        %v1560 = vmul.u32 %v1552, 2
        %v1561 = vmul.u32 %v1553, 2
        %v1562 = vmul.u32 %v1554, 16
        %v1563 = vmul.u32 %v1555, 16
        %v1564 = vmul.u32 %v1556, 16
        %v1565 = vmul.u32 %v1557, 16
        %v1566 = vmul.u32 %v1558, 16
        %v1567 = vmul.u32 %v1559, 16
        %v1568 = vmul.u32 %v1560, 16
        %v1569 = vmul.u32 %v1561, 16
        %v1570 = vmul.u32 %v1545, 2
        %v1571 = vadd.s32 %v1562, %v1570
        %v1572 = vadd.s32 %v1563, %v1570
        %v1573 = vadd.s32 %v1564, %v1570
        %v1574 = vadd.s32 %v1565, %v1570
        %v1575 = vadd.s32 %v1566, %v1570
        %v1576 = vadd.s32 %v1567, %v1570
        %v1577 = vadd.s32 %v1568, %v1570
        %v1578 = vadd.s32 %v1569, %v1570
        %v1579 = vrot.slane %v1527, 1
        %v1580 = vrot.slane %v1528, 1
        %v1581 = vsel %vm786, %v1579, %v1580
        %v1582 = vrot.slane %v1529, 1
        %v1583 = vrot.slane %v1530, 1
        %v1584 = vsel %vm786, %v1582, %v1583
        %v1585 = vrot.slane %v1531, 1
        %v1586 = vrot.slane %v1532, 1
        %v1587 = vsel %vm786, %v1585, %v1586
        %v1588 = vrot.slane %v1533, 1
        %v1589 = vrot.slane %v1534, 1
        %v1590 = vsel %vm786, %v1588, %v1589
        %v1591 = vrot.slane %v1535, 1
        %v1592 = vrot.slane %v1536, 1
        %v1593 = vsel %vm786, %v1591, %v1592
        %v1594 = vrot.slane %v1537, 1
        %v1595 = vrot.slane %v1538, 1
        %v1596 = vsel %vm786, %v1594, %v1595
        %v1597 = vrot.slane %v1539, 1
        %v1598 = vrot.slane %v1540, 1
        %v1599 = vsel %vm786, %v1597, %v1598
        %v1600 = vrot.slane %v1541, 1
        %v1601 = vrot.slane %v1542, 1
        %v1602 = vsel %vm786, %v1600, %v1601
        %v1603 = vadd.s32 %v1571, %v1581
        %v1604 = vadd.s32 %v1572, %v1584
        %v1605 = vadd.s32 %v1573, %v1587
        %v1606 = vadd.s32 %v1574, %v1590
        %v1607 = vadd.s32 %v1575, %v1593
        %v1608 = vadd.s32 %v1576, %v1596
        %v1609 = vadd.s32 %v1577, %v1599
        %v1610 = vadd.s32 %v1578, %v1602
        %1611 = vst.msk [vmem:[%s455] sm:$0xff] %vm888, %v1603
        %1612 = vst.msk [vmem:[%s455 + $0x8] sm:$0xff] %vm888, %v1604
        %1613 = vst.msk [vmem:[%s455 + $0x10] sm:$0xff] %vm888, %v1605
        %1614 = vst.msk [vmem:[%s455 + $0x18] sm:$0xff] %vm888, %v1606
        %1615 = vst.msk [vmem:[%s455 + $0x20] sm:$0xff] %vm888, %v1607
        %1616 = vst.msk [vmem:[%s455 + $0x28] sm:$0xff] %vm888, %v1608
        %1617 = vst.msk [vmem:[%s455 + $0x30] sm:$0xff] %vm888, %v1609
        %1618 = vst.msk [vmem:[%s455 + $0x38] sm:$0xff] %vm888, %v1610
        %v1635 = vrot.slane %v1487, 1
        %v1636 = vrot.slane %v1488, 1
        %v1637 = vsel %vm786, %v1635, %v1636
        %v1638 = vrot.slane %v1489, 1
        %v1639 = vrot.slane %v1490, 1
        %v1640 = vsel %vm786, %v1638, %v1639
        %v1641 = vrot.slane %v1491, 1
        %v1642 = vrot.slane %v1492, 1
        %v1643 = vsel %vm786, %v1641, %v1642
        %v1644 = vrot.slane %v1493, 1
        %v1645 = vrot.slane %v1494, 1
        %v1646 = vsel %vm786, %v1644, %v1645
        %v1647 = vrot.slane %v1495, 1
        %v1648 = vrot.slane %v1496, 1
        %v1649 = vsel %vm786, %v1647, %v1648
        %v1650 = vrot.slane %v1497, 1
        %v1651 = vrot.slane %v1498, 1
        %v1652 = vsel %vm786, %v1650, %v1651
        %v1653 = vrot.slane %v1499, 1
        %v1654 = vrot.slane %v1500, 1
        %v1655 = vsel %vm786, %v1653, %v1654
        %v1656 = vrot.slane %v1501, 1
        %v1657 = vrot.slane %v1502, 1
        %v1658 = vsel %vm786, %v1656, %v1657
        %v1667 = vsel %vm888, %v1637, 0.0
        %v1668 = vsel %vm888, %v1640, 0.0
        %v1669 = vsel %vm888, %v1643, 0.0
        %v1670 = vsel %vm888, %v1646, 0.0
        %v1671 = vsel %vm888, %v1649, 0.0
        %v1672 = vsel %vm888, %v1652, 0.0
        %v1673 = vsel %vm888, %v1655, 0.0
        %v1674 = vsel %vm888, %v1658, 0.0
        %v1675 = vadd.f32 %v1185, %v1667
        %v1676 = vadd.f32 %v1190, %v1668
        %v1677 = vadd.f32 %v1195, %v1669
        %v1678 = vadd.f32 %v1200, %v1670
        %v1679 = vadd.f32 %v1205, %v1671
        %v1680 = vadd.f32 %v1210, %v1672
        %v1681 = vadd.f32 %v1215, %v1673
        %v1682 = vadd.f32 %v1220, %v1674
        %vm1683 = vcmp.gt.f32.partialorder %v1675, 0.0
        %vm1684 = vcmp.gt.f32.partialorder %v1676, 0.0
        %vm1685 = vcmp.gt.f32.partialorder %v1677, 0.0
        %vm1686 = vcmp.gt.f32.partialorder %v1678, 0.0
        %vm1687 = vcmp.gt.f32.partialorder %v1679, 0.0
        %vm1688 = vcmp.gt.f32.partialorder %v1680, 0.0
        %vm1689 = vcmp.gt.f32.partialorder %v1681, 0.0
        %vm1690 = vcmp.gt.f32.partialorder %v1682, 0.0
        %v1691 = vstv %s477
        %v1692 = vmul.f32 %v1691, %v1675
        %v1693 = vmul.f32 %v1691, %v1676
        %v1694 = vmul.f32 %v1691, %v1677
        %v1695 = vmul.f32 %v1691, %v1678
        %v1696 = vmul.f32 %v1691, %v1679
        %v1697 = vmul.f32 %v1691, %v1680
        %v1698 = vmul.f32 %v1691, %v1681
        %v1699 = vmul.f32 %v1691, %v1682
        %v1700 = vsel %vm1683, %v1675, %v1692
        %v1701 = vsel %vm1684, %v1676, %v1693
        %v1702 = vsel %vm1685, %v1677, %v1694
        %v1703 = vsel %vm1686, %v1678, %v1695
        %v1704 = vsel %vm1687, %v1679, %v1696
        %v1705 = vsel %vm1688, %v1680, %v1697
        %v1706 = vsel %vm1689, %v1681, %v1698
        %v1707 = vsel %vm1690, %v1682, %v1699
        %1708 = vst.msk [vmem:[%s472] sm:$0xff] %vm897, %v1700
        %1709 = vst.msk [vmem:[%s472 + $0x8] sm:$0xff] %vm897, %v1701
        %1710 = vst.msk [vmem:[%s472 + $0x10] sm:$0xff] %vm897, %v1702
        %1711 = vst.msk [vmem:[%s472 + $0x18] sm:$0xff] %vm897, %v1703
        %1712 = vst.msk [vmem:[%s472 + $0x20] sm:$0xff] %vm897, %v1704
        %1713 = vst.msk [vmem:[%s472 + $0x28] sm:$0xff] %vm897, %v1705
        %1714 = vst.msk [vmem:[%s472 + $0x30] sm:$0xff] %vm897, %v1706
        %1715 = vst.msk [vmem:[%s472 + $0x38] sm:$0xff] %vm897, %v1707
        %s1716 = smul.u32 8, %s36
        %p1717 = scmp.lt.s32.totalorder %s35, 1
        %s1718 = scalar_select %p1717, %s35, 1
        %p1719 = scmp.lt.s32.totalorder %s1716, 7
        %s1720 = scalar_select %p1719, %s1716, 7
        %s1721 = smul.addr %s1718, 8
        %s1722 = sadd.s32 %s1720, %s1721
        %s1723 = smul.addr %s1722, 8
        %s1724 = scalar_lea.vmem %s8, %s1723
        %s1725 = sand.u32 %s267, 1
        %s1726 = scalar_lea.sflag [#allocation4], %s1725
        %s1727 = sand.u32 %s267, 1
        %s1728 = smul.addr %s1727, 64
        %s1729 = scalar_lea.vmem [#allocation9], %s1728
        // Predicated region
        $region65: #{tpu_custom_call.1} parent=51 // pred_check
          %p1730 = pneg %p249
        $region66: #{tpu_custom_call.1} parent=51 // pred_check_branch
          %1732 = sbr.rel (%p1730) target = $region68
        $region67: #{tpu_custom_call.1} parent=51 // pred_region
          %s1733 = smul.u32 8, %s36
        $region68: #{tpu_custom_call.1} parent=51 // pred_fallthru
          _
        // Predicated region
        $region69: #{tpu_custom_call.1} parent=51 // pred_check
          %p1734 = pneg %p277
        $region70: #{tpu_custom_call.1} parent=51 // pred_check_branch
          %1736 = sbr.rel (%p1734) target = $region72
        $region71: #{tpu_custom_call.1} parent=51 // pred_region
          %s1737 = smul.u32 8, %s36
          %s1739 = ssub.s32 1024, 1024
          %1740 = vsyncadd %s1726, %s1739
          %s1741 = smul.addr %s35, 8
          %s1742 = sadd.s32 %s1737, %s1741
          %s1743 = smul.addr %s1742, 128
          %s1744 = scalar_lea.hbm %s9, %s1743
          %s1745 = sshll.u32 %s1729, 4
          %s1746 = int_to_ptr.vmem [resolvable:$true] %s1745
          %1751 = dma.vmem_to_hbm [thread:$0]  %s1746, 1024, %s1744, %s1726, 128, 128, 8
        $region72: #{tpu_custom_call.1} parent=51 // pred_fallthru
          _
      $region52: #{tpu_custom_call.1} parent=5 // pred_fallthru
        _
      %p1752 = scmp.le.s32.totalorder 2, %s26
      // Predicated region
      $region73: #{tpu_custom_call.1} parent=5 // pred_check
        %p1753 = pneg %p1752
      $region74: #{tpu_custom_call.1} parent=5 // pred_check_branch
        %1755 = sbr.rel (%p1753) target = $region76
      $region75: #{tpu_custom_call.1} parent=5 // pred_region
        %s1756 = ssub.s32 %s26, 2
        // Predicated region
        $region77: #{tpu_custom_call.1} parent=75 // pred_check
          %p1757 = pneg %p255
        $region78: #{tpu_custom_call.1} parent=75 // pred_check_branch
          %1759 = sbr.rel (%p1757) target = $region80
        $region79: #{tpu_custom_call.1} parent=75 // pred_region
          %s1760 = smul.u32 8, %s38
          %p1761 = scmp.lt.s32.totalorder %s37, 1
          %s1762 = scalar_select %p1761, %s37, 1
          %p1763 = scmp.lt.s32.totalorder %s1760, 7
          %s1764 = scalar_select %p1763, %s1760, 7
          %s1765 = smul.addr %s1762, 8
          %s1766 = sadd.s32 %s1764, %s1765
          %s1767 = smul.addr %s1766, 8
          %s1768 = scalar_lea.vmem %s8, %s1767
        $region80: #{tpu_custom_call.1} parent=75 // pred_fallthru
          _
        // Predicated region
        $region81: #{tpu_custom_call.1} parent=75 // pred_check
          %p1769 = pneg %p283
        $region82: #{tpu_custom_call.1} parent=75 // pred_check_branch
          %1771 = sbr.rel (%p1769) target = $region84
        $region83: #{tpu_custom_call.1} parent=75 // pred_region
          %s1772 = sand.u32 %s268, 1
          %s1773 = scalar_lea.sflag [#allocation4], %s1772
          %s1774 = sand.u32 %s268, 1
          %s1775 = smul.addr %s1774, 64
          %s1776 = scalar_lea.vmem [#allocation9], %s1775
          %1777 = dma.done %s1773, 1024
        $region84: #{tpu_custom_call.1} parent=75 // pred_fallthru
          _
      $region76: #{tpu_custom_call.1} parent=5 // pred_fallthru
        _
    $region6: #{tpu_custom_call.1} parent=1 // loop_footer
      %s30 = sadd.s32 1, %s26
    $region7: #{tpu_custom_call.1} parent=1 // loop_footer_branch
      %25 = sbr.rel target = $region3
    $region8: #{tpu_custom_call.1} parent=1 // loop_exit
      _
    %1778 = vsyncpa [#allocation3], 1
    %s1779 = scalar_lea.sflag [#allocation3], 1
    %1780 = vsyncpa %s1779, 1
    %1781 = vsyncpa [#allocation7], 1
    %s1782 = scalar_lea.sflag [#allocation7], 1
    %1783 = vsyncpa %s1782, 1
    %1784 = vsyncpa [#allocation4], 1
    %s1785 = scalar_lea.sflag [#allocation4], 1
    %1786 = vsyncpa %s1785, 1
    %1787 = vsyncpa [#allocation5], 1
    %s1788 = scalar_lea.sflag [#allocation5], 1
    %1789 = vsyncpa %s1788, 1

</llo_original>
